<compile_context>
chip_gen: v7x
topology: tpu7x:2x2x1
jax: 0.10.0
libtpu: 0.0.40
codegen_flags: <defaults>
</compile_context>

<pallas_src>
import jax
import jax.numpy as jnp
from jax import lax
from jax.experimental import pallas as pl
from jax.experimental.pallas import tpu as pltpu

NEG_INF = -1e30  # bias for padded vocab columns (exp underflows to 0)
NCTX = 7         # context length of the module (7 * ninp input features)


def _round_up(x, m):
    return ((x + m - 1) // m) * m


def _device_config(batch):
    """Returns (grid steps, use bf16 hidden path).

    2 steps on v7x so both TensorCores get work via the 'parallel' batch axis;
    1 step elsewhere.  bf16 VPU/EUP path only on v6e/v7x (v5e has no bf16 VPU)."""
    try:
        kind = jax.devices()[0].device_kind.lower()
    except Exception:
        kind = ""
    is_v7 = "v7" in kind
    hidden_bf16 = ("v6" in kind) or is_v7
    steps = 2 if (is_v7 and batch >= 32) else 1
    return steps, hidden_bf16


def _make_kernel(hidden_bf16):
    def fnn_kernel(ids_ref, emb_ref, w1_ref, b1_ref, w2_ref, b2_ref, out_ref):
        # ids_ref: (TM, 7) int32        emb_ref: (Vp, ninp) bf16
        # w1_ref:  (7, ninp, Hp) bf16   b1_ref:  (1, Hp) f32
        # w2_ref:  (Hp, Vp) bf16        b2_ref:  (1, Vp) f32 (padded cols = -1e30)
        # out_ref: (TM, Vp)             log-probabilities
        tm = ids_ref.shape[0]
        vp, _ = emb_ref.shape
        hp = b1_ref.shape[-1]

        ids = ids_ref[...]                                         # (tm, 7) int32
        emb = emb_ref[...]                                         # (Vp, ninp) bf16
        vocab_iota = lax.broadcasted_iota(jnp.int32, (tm, vp), 1)

        # Fused embedding gather + first linear layer:
        #   x_p   = onehot(ids[:, p]) @ emb   (exact bf16 row gather on the MXU)
        #   h_acc += x_p @ W1[p]
        h_acc = jnp.zeros((tm, hp), jnp.float32)
        for p in range(NCTX):                                      # static unroll
            onehot = (ids[:, p:p + 1] == vocab_iota).astype(jnp.bfloat16)
            x_p = jnp.dot(onehot, emb, preferred_element_type=jnp.float32)
            h_acc = h_acc + jnp.dot(x_p.astype(jnp.bfloat16), w1_ref[p],
                                    preferred_element_type=jnp.float32)

        if hidden_bf16:
            # v6e / v7x: bf16 bias-add + tanh (cast the f32 accumulator once);
            # h is already bf16 for the second MXU matmul.
            h = jnp.tanh(h_acc.astype(jnp.bfloat16)
                         + b1_ref[...].astype(jnp.bfloat16))
        else:
            # v5e: no bf16 VPU/EUP -> stay in f32, cast only for the MXU.
            h = jnp.tanh(h_acc + b1_ref[...]).astype(jnp.bfloat16)

        logits = (jnp.dot(h, w2_ref[...], preferred_element_type=jnp.float32)
                  + b2_ref[...])

        # numerically-stable log_softmax over the vocab axis (f32 throughout)
        m = jnp.max(logits, axis=-1, keepdims=True)
        shifted = logits - m
        lse = jnp.log(jnp.sum(jnp.exp(shifted), axis=-1, keepdims=True))
        out_ref[...] = (shifted - lse).astype(out_ref.dtype)

    return fnn_kernel


def fnn_forward_batched(token_ids, emb_p, w1_p, b1_p, w2_p, b2_p, ntoken,
                        *, out_dtype=jnp.float32):
    """token_ids: (B, 7) int32 (or (7,)).  Returns (B, ntoken) log-probs; each row
    is exactly FNNModel.forward applied to that 7-token context."""
    token_ids = jnp.asarray(token_ids, jnp.int32)
    if token_ids.ndim == 1:
        token_ids = token_ids[None, :]
    B = token_ids.shape[0]

    Vp, ninp = emb_p.shape
    Hp = w1_p.shape[-1]

    steps, hidden_bf16 = _device_config(B)
    tm = _round_up(max(1, -(-B // steps)), 16)   # >= 16 rows, multiple of 16
    Bp = tm * steps

    ids = token_ids if Bp == B else jnp.pad(token_ids, ((0, Bp - B), (0, 0)))

    out_bytes = jnp.dtype(out_dtype).itemsize
    out = pl.pallas_call(
        _make_kernel(hidden_bf16),
        out_shape=jax.ShapeDtypeStruct((Bp, Vp), out_dtype),
        grid=(steps,),
        in_specs=[
            pl.BlockSpec((tm, NCTX), lambda i: (i, 0)),           # token ids / tile
            pl.BlockSpec((Vp, ninp), lambda i: (0, 0)),           # emb: resident
            pl.BlockSpec((NCTX, ninp, Hp), lambda i: (0, 0, 0)),  # W1: resident
            pl.BlockSpec((1, Hp), lambda i: (0, 0)),              # b1: resident
            pl.BlockSpec((Hp, Vp), lambda i: (0, 0)),             # W2: resident
            pl.BlockSpec((1, Vp), lambda i: (0, 0)),              # b2: resident
        ],
        out_specs=pl.BlockSpec((tm, Vp), lambda i: (i, 0)),       # lane-dense out
        compiler_params=pltpu.CompilerParams(
            dimension_semantics=("parallel",),   # shard batch across v7x's 2 TCs
            vmem_limit_bytes=32 * 1024 * 1024,   # real footprint is only a few MiB
        ),
        cost_estimate=pl.CostEstimate(
            flops=2 * Bp * (NCTX * (Vp * ninp + ninp * Hp) + Hp * Vp),
            transcendentals=Bp * (Hp + Vp),      # tanh + exp
            bytes_accessed=(Bp * NCTX * 4 + Vp * ninp * 2 + NCTX * ninp * Hp * 2
                            + Hp * 4 + Hp * Vp * 2 + Vp * 4 + Bp * Vp * out_bytes),
        ),
    )(ids, emb_p, w1_p, b1_p, w2_p, b2_p)

    return out[:B, :ntoken]


def fnn_forward(token_ids_7, emb_p, w1_p, b1_p, w2_p, b2_p, ntoken):
    """Original-module semantics: 7 token ids -> (1, ntoken) log-probs."""
    return fnn_forward_batched(jnp.asarray(token_ids_7)[None, :],
                               emb_p, w1_p, b1_p, w2_p, b2_p, ntoken)


def init_params(key, ntoken, ninp, nhid):
    """Deterministic parameter init mirroring FNNModel.__init__ / init_weights
    (PyTorch layouts: w1 (nhid, 7*ninp), w2 (ntoken, nhid))."""
    k_emb, k_w1, k_b1, k_w2, k_b2 = jax.random.split(key, 5)
    initrange = 0.1

    # nn.Embedding weight -> uniform(-0.1, 0.1)
    emb_w = jax.random.uniform(k_emb, (ntoken, ninp), jnp.float32,
                               -initrange, initrange)

    # nn.Linear(7*ninp, nhid): default PyTorch init (uniform +- 1/sqrt(fan_in))
    fan_in1 = NCTX * ninp
    bound1 = 1.0 / (fan_in1 ** 0.5)
    w1 = jax.random.uniform(k_w1, (nhid, fan_in1), jnp.float32, -bound1, bound1)
    b1 = jax.random.uniform(k_b1, (nhid,), jnp.float32, -bound1, bound1)

    # nn.Linear(nhid, ntoken): weight overwritten to uniform(-0.1, 0.1); default bias
    w2 = jax.random.uniform(k_w2, (ntoken, nhid), jnp.float32, -initrange, initrange)
    bound2 = 1.0 / (nhid ** 0.5)
    b2 = jax.random.uniform(k_b2, (ntoken,), jnp.float32, -bound2, bound2)

    return emb_w, w1, b1, w2, b2


def prepare_kernel_params(emb_w, w1, b1, w2, b2):
    """One-time packing: pad vocab/hidden to multiples of 128, pre-transpose to
    (in, out) layout, split W1 per context position, cast MXU operands to bf16."""
    ntoken, ninp = emb_w.shape
    nhid, K = w1.shape
    assert K == NCTX * ninp
    Vp = _round_up(ntoken, 128)   # vocab padded (lane-dense output / onehot width)
    Hp = _round_up(nhid, 128)     # hidden padded

    emb_p = (jnp.zeros((Vp, ninp), jnp.float32)
             .at[:ntoken].set(emb_w).astype(jnp.bfloat16))
    w1_p = (jnp.zeros((K, Hp), jnp.float32)
            .at[:, :nhid].set(w1.T)
            .reshape(NCTX, ninp, Hp).astype(jnp.bfloat16))
    b1_p = jnp.zeros((1, Hp), jnp.float32).at[:, :nhid].set(b1[None, :])
    w2_p = (jnp.zeros((Hp, Vp), jnp.float32)
            .at[:nhid, :ntoken].set(w2.T).astype(jnp.bfloat16))
    b2_p = jnp.full((1, Vp), NEG_INF, jnp.float32).at[:, :ntoken].set(b2[None, :])
    return emb_p, w1_p, b1_p, w2_p, b2_p


if __name__ == "__main__":
    ntoken, ninp, nhid = 256, 32, 64   # small shapes consistent with the module
    B = 64                             # batch of 7-token contexts per kernel call

    key = jax.random.PRNGKey(0)
    k_params, k_tokens = jax.random.split(key)

    emb_w, w1, b1, w2, b2 = init_params(k_params, ntoken, ninp, nhid)
    params = prepare_kernel_params(emb_w, w1, b1, w2, b2)

    token_ids = jax.random.randint(k_tokens, (B, NCTX), 0, ntoken, dtype=jnp.int32)

    fwd = jax.jit(lambda ids: fnn_forward_batched(ids, *params, ntoken))
    log_probs = fwd(token_ids)
    jax.block_until_ready(log_probs)
    assert log_probs.shape == (B, ntoken)

    # sanity 1: each row is a valid log-probability distribution
    total_prob = jnp.sum(jnp.exp(log_probs.astype(jnp.float32)), axis=-1)
    assert float(jnp.max(jnp.abs(total_prob - 1.0))) < 1e-3

    # sanity 2: matches a pure-JAX reference using the same bf16 MXU operands
    emb_bf = emb_w.astype(jnp.bfloat16)
    x_ref = jnp.take(emb_bf, token_ids, axis=0).reshape(B, NCTX * ninp)
    h_ref = jnp.tanh(jnp.dot(x_ref, w1.T.astype(jnp.bfloat16),
                             preferred_element_type=jnp.float32) + b1)
    logits_ref = jnp.dot(h_ref.astype(jnp.bfloat16), w2.T.astype(jnp.bfloat16),
                         preferred_element_type=jnp.float32) + b2
    ref = jax.nn.log_softmax(logits_ref, axis=-1)
    assert float(jnp.max(jnp.abs(log_probs.astype(jnp.float32) - ref))) < 2e-2

    # sanity 3: the single-context path (original module signature) agrees
    lp_single = fnn_forward(token_ids[0], *params, ntoken)
    jax.block_until_ready(lp_single)
    assert lp_single.shape == (1, ntoken)
    assert bool(jnp.allclose(lp_single[0], log_probs[0], atol=1e-4))

    print("KERNEL_OK")
</pallas_src>

<mosaic_0001>
module attributes {stable_mosaic.version = 11 : i64} {
  func.func @fnn_kernel(%arg0: i32, %arg1: memref<64x7xi32, #tpu.memory_space<vmem>>, %arg2: memref<256x32xbf16, #tpu.memory_space<vmem>>, %arg3: memref<7x32x128xbf16, #tpu.memory_space<vmem>>, %arg4: memref<1x128xf32, #tpu.memory_space<vmem>>, %arg5: memref<128x256xbf16, #tpu.memory_space<vmem>>, %arg6: memref<1x256xf32, #tpu.memory_space<vmem>>, %arg7: memref<64x256xf32, #tpu.memory_space<vmem>>) attributes {dimension_semantics = [#tpu.dimension_semantics<parallel>], iteration_bounds = array<i64: 1>, scalar_prefetch = 0 : i64, scratch_operands = 0 : i64, tpu.core_type = #tpu.core_type<tc>, window_params = [{transform_indices = @transform_0, window_bounds = array<i64: 64, 7>}, {pipeline_mode = #tpu.pipeline_mode<synchronous>, transform_indices = @transform_1, window_bounds = array<i64: 256, 32>}, {pipeline_mode = #tpu.pipeline_mode<synchronous>, transform_indices = @transform_2, window_bounds = array<i64: 7, 32, 128>}, {pipeline_mode = #tpu.pipeline_mode<synchronous>, transform_indices = @transform_3, window_bounds = array<i64: 1, 128>}, {pipeline_mode = #tpu.pipeline_mode<synchronous>, transform_indices = @transform_4, window_bounds = array<i64: 128, 256>}, {pipeline_mode = #tpu.pipeline_mode<synchronous>, transform_indices = @transform_5, window_bounds = array<i64: 1, 256>}, {transform_indices = @transform_6, window_bounds = array<i64: 64, 256>}]} {
    %c0 = arith.constant 0 : index
    %c0_0 = arith.constant 0 : index
    %0 = vector.load %arg1[%c0, %c0_0] : memref<64x7xi32, #tpu.memory_space<vmem>>, vector<64x7xi32>
    %c0_1 = arith.constant 0 : index
    %c0_2 = arith.constant 0 : index
    %1 = vector.load %arg2[%c0_1, %c0_2] : memref<256x32xbf16, #tpu.memory_space<vmem>>, vector<256x32xbf16>
    %2 = tpu.iota {dimensions = array<i32: 1>} : vector<64x256xi32>
    %cst = arith.constant 0.000000e+00 : f32
    %3 = vector.broadcast %cst : f32 to vector<64x128xf32>
    %4 = vector.extract_strided_slice %0 {offsets = [0, 0], sizes = [64, 1], strides = [1, 1]} : vector<64x7xi32> to vector<64x1xi32>
    %5 = vector.broadcast %4 : vector<64x1xi32> to vector<64x256xi32>
    %6 = arith.cmpi eq, %5, %2 : vector<64x256xi32>
    %7 = arith.extui %6 : vector<64x256xi1> to vector<64x256xi32>
    %8 = arith.sitofp %7 : vector<64x256xi32> to vector<64x256xf32>
    %9 = arith.truncf %8 : vector<64x256xf32> to vector<64x256xbf16>
    %cst_3 = arith.constant dense<0.000000e+00> : vector<64x32xf32>
    %10 = tpu.matmul %9, %1, %cst_3 {dimension_numbers = #tpu.dot_dimension_numbers<[1], [0], [0], [1], [0, 0, 1, 1], [], []>} : vector<64x256xbf16>, vector<256x32xbf16>, vector<64x32xf32> -> vector<64x32xf32>
    %11 = arith.truncf %10 : vector<64x32xf32> to vector<64x32xbf16>
    %c0_4 = arith.constant 0 : index
    %c0_5 = arith.constant 0 : index
    %c0_6 = arith.constant 0 : index
    %12 = vector.load %arg3[%c0_4, %c0_5, %c0_6] : memref<7x32x128xbf16, #tpu.memory_space<vmem>>, vector<1x32x128xbf16>
    %13 = vector.shape_cast %12 : vector<1x32x128xbf16> to vector<32x128xbf16>
    %cst_7 = arith.constant dense<0.000000e+00> : vector<64x128xf32>
    %14 = tpu.matmul %11, %13, %cst_7 {dimension_numbers = #tpu.dot_dimension_numbers<[1], [0], [0], [1], [0, 0, 1, 1], [], []>} : vector<64x32xbf16>, vector<32x128xbf16>, vector<64x128xf32> -> vector<64x128xf32>
    %15 = arith.addf %3, %14 : vector<64x128xf32>
    %16 = vector.extract_strided_slice %0 {offsets = [0, 1], sizes = [64, 1], strides = [1, 1]} : vector<64x7xi32> to vector<64x1xi32>
    %17 = vector.broadcast %16 : vector<64x1xi32> to vector<64x256xi32>
    %18 = arith.cmpi eq, %17, %2 : vector<64x256xi32>
    %19 = arith.extui %18 : vector<64x256xi1> to vector<64x256xi32>
    %20 = arith.sitofp %19 : vector<64x256xi32> to vector<64x256xf32>
    %21 = arith.truncf %20 : vector<64x256xf32> to vector<64x256xbf16>
    %cst_8 = arith.constant dense<0.000000e+00> : vector<64x32xf32>
    %22 = tpu.matmul %21, %1, %cst_8 {dimension_numbers = #tpu.dot_dimension_numbers<[1], [0], [0], [1], [0, 0, 1, 1], [], []>} : vector<64x256xbf16>, vector<256x32xbf16>, vector<64x32xf32> -> vector<64x32xf32>
    %23 = arith.truncf %22 : vector<64x32xf32> to vector<64x32xbf16>
    %c1 = arith.constant 1 : index
    %c0_9 = arith.constant 0 : index
    %c0_10 = arith.constant 0 : index
    %24 = vector.load %arg3[%c1, %c0_9, %c0_10] : memref<7x32x128xbf16, #tpu.memory_space<vmem>>, vector<1x32x128xbf16>
    %25 = vector.shape_cast %24 : vector<1x32x128xbf16> to vector<32x128xbf16>
    %cst_11 = arith.constant dense<0.000000e+00> : vector<64x128xf32>
    %26 = tpu.matmul %23, %25, %cst_11 {dimension_numbers = #tpu.dot_dimension_numbers<[1], [0], [0], [1], [0, 0, 1, 1], [], []>} : vector<64x32xbf16>, vector<32x128xbf16>, vector<64x128xf32> -> vector<64x128xf32>
    %27 = arith.addf %15, %26 : vector<64x128xf32>
    %28 = vector.extract_strided_slice %0 {offsets = [0, 2], sizes = [64, 1], strides = [1, 1]} : vector<64x7xi32> to vector<64x1xi32>
    %29 = vector.broadcast %28 : vector<64x1xi32> to vector<64x256xi32>
    %30 = arith.cmpi eq, %29, %2 : vector<64x256xi32>
    %31 = arith.extui %30 : vector<64x256xi1> to vector<64x256xi32>
    %32 = arith.sitofp %31 : vector<64x256xi32> to vector<64x256xf32>
    %33 = arith.truncf %32 : vector<64x256xf32> to vector<64x256xbf16>
    %cst_12 = arith.constant dense<0.000000e+00> : vector<64x32xf32>
    %34 = tpu.matmul %33, %1, %cst_12 {dimension_numbers = #tpu.dot_dimension_numbers<[1], [0], [0], [1], [0, 0, 1, 1], [], []>} : vector<64x256xbf16>, vector<256x32xbf16>, vector<64x32xf32> -> vector<64x32xf32>
    %35 = arith.truncf %34 : vector<64x32xf32> to vector<64x32xbf16>
    %c2 = arith.constant 2 : index
    %c0_13 = arith.constant 0 : index
    %c0_14 = arith.constant 0 : index
    %36 = vector.load %arg3[%c2, %c0_13, %c0_14] : memref<7x32x128xbf16, #tpu.memory_space<vmem>>, vector<1x32x128xbf16>
    %37 = vector.shape_cast %36 : vector<1x32x128xbf16> to vector<32x128xbf16>
    %cst_15 = arith.constant dense<0.000000e+00> : vector<64x128xf32>
    %38 = tpu.matmul %35, %37, %cst_15 {dimension_numbers = #tpu.dot_dimension_numbers<[1], [0], [0], [1], [0, 0, 1, 1], [], []>} : vector<64x32xbf16>, vector<32x128xbf16>, vector<64x128xf32> -> vector<64x128xf32>
    %39 = arith.addf %27, %38 : vector<64x128xf32>
    %40 = vector.extract_strided_slice %0 {offsets = [0, 3], sizes = [64, 1], strides = [1, 1]} : vector<64x7xi32> to vector<64x1xi32>
    %41 = vector.broadcast %40 : vector<64x1xi32> to vector<64x256xi32>
    %42 = arith.cmpi eq, %41, %2 : vector<64x256xi32>
    %43 = arith.extui %42 : vector<64x256xi1> to vector<64x256xi32>
    %44 = arith.sitofp %43 : vector<64x256xi32> to vector<64x256xf32>
    %45 = arith.truncf %44 : vector<64x256xf32> to vector<64x256xbf16>
    %cst_16 = arith.constant dense<0.000000e+00> : vector<64x32xf32>
    %46 = tpu.matmul %45, %1, %cst_16 {dimension_numbers = #tpu.dot_dimension_numbers<[1], [0], [0], [1], [0, 0, 1, 1], [], []>} : vector<64x256xbf16>, vector<256x32xbf16>, vector<64x32xf32> -> vector<64x32xf32>
    %47 = arith.truncf %46 : vector<64x32xf32> to vector<64x32xbf16>
    %c3 = arith.constant 3 : index
    %c0_17 = arith.constant 0 : index
    %c0_18 = arith.constant 0 : index
    %48 = vector.load %arg3[%c3, %c0_17, %c0_18] : memref<7x32x128xbf16, #tpu.memory_space<vmem>>, vector<1x32x128xbf16>
    %49 = vector.shape_cast %48 : vector<1x32x128xbf16> to vector<32x128xbf16>
    %cst_19 = arith.constant dense<0.000000e+00> : vector<64x128xf32>
    %50 = tpu.matmul %47, %49, %cst_19 {dimension_numbers = #tpu.dot_dimension_numbers<[1], [0], [0], [1], [0, 0, 1, 1], [], []>} : vector<64x32xbf16>, vector<32x128xbf16>, vector<64x128xf32> -> vector<64x128xf32>
    %51 = arith.addf %39, %50 : vector<64x128xf32>
    %52 = vector.extract_strided_slice %0 {offsets = [0, 4], sizes = [64, 1], strides = [1, 1]} : vector<64x7xi32> to vector<64x1xi32>
    %53 = vector.broadcast %52 : vector<64x1xi32> to vector<64x256xi32>
    %54 = arith.cmpi eq, %53, %2 : vector<64x256xi32>
    %55 = arith.extui %54 : vector<64x256xi1> to vector<64x256xi32>
    %56 = arith.sitofp %55 : vector<64x256xi32> to vector<64x256xf32>
    %57 = arith.truncf %56 : vector<64x256xf32> to vector<64x256xbf16>
    %cst_20 = arith.constant dense<0.000000e+00> : vector<64x32xf32>
    %58 = tpu.matmul %57, %1, %cst_20 {dimension_numbers = #tpu.dot_dimension_numbers<[1], [0], [0], [1], [0, 0, 1, 1], [], []>} : vector<64x256xbf16>, vector<256x32xbf16>, vector<64x32xf32> -> vector<64x32xf32>
    %59 = arith.truncf %58 : vector<64x32xf32> to vector<64x32xbf16>
    %c4 = arith.constant 4 : index
    %c0_21 = arith.constant 0 : index
    %c0_22 = arith.constant 0 : index
    %60 = vector.load %arg3[%c4, %c0_21, %c0_22] : memref<7x32x128xbf16, #tpu.memory_space<vmem>>, vector<1x32x128xbf16>
    %61 = vector.shape_cast %60 : vector<1x32x128xbf16> to vector<32x128xbf16>
    %cst_23 = arith.constant dense<0.000000e+00> : vector<64x128xf32>
    %62 = tpu.matmul %59, %61, %cst_23 {dimension_numbers = #tpu.dot_dimension_numbers<[1], [0], [0], [1], [0, 0, 1, 1], [], []>} : vector<64x32xbf16>, vector<32x128xbf16>, vector<64x128xf32> -> vector<64x128xf32>
    %63 = arith.addf %51, %62 : vector<64x128xf32>
    %64 = vector.extract_strided_slice %0 {offsets = [0, 5], sizes = [64, 1], strides = [1, 1]} : vector<64x7xi32> to vector<64x1xi32>
    %65 = vector.broadcast %64 : vector<64x1xi32> to vector<64x256xi32>
    %66 = arith.cmpi eq, %65, %2 : vector<64x256xi32>
    %67 = arith.extui %66 : vector<64x256xi1> to vector<64x256xi32>
    %68 = arith.sitofp %67 : vector<64x256xi32> to vector<64x256xf32>
    %69 = arith.truncf %68 : vector<64x256xf32> to vector<64x256xbf16>
    %cst_24 = arith.constant dense<0.000000e+00> : vector<64x32xf32>
    %70 = tpu.matmul %69, %1, %cst_24 {dimension_numbers = #tpu.dot_dimension_numbers<[1], [0], [0], [1], [0, 0, 1, 1], [], []>} : vector<64x256xbf16>, vector<256x32xbf16>, vector<64x32xf32> -> vector<64x32xf32>
    %71 = arith.truncf %70 : vector<64x32xf32> to vector<64x32xbf16>
    %c5 = arith.constant 5 : index
    %c0_25 = arith.constant 0 : index
    %c0_26 = arith.constant 0 : index
    %72 = vector.load %arg3[%c5, %c0_25, %c0_26] : memref<7x32x128xbf16, #tpu.memory_space<vmem>>, vector<1x32x128xbf16>
    %73 = vector.shape_cast %72 : vector<1x32x128xbf16> to vector<32x128xbf16>
    %cst_27 = arith.constant dense<0.000000e+00> : vector<64x128xf32>
    %74 = tpu.matmul %71, %73, %cst_27 {dimension_numbers = #tpu.dot_dimension_numbers<[1], [0], [0], [1], [0, 0, 1, 1], [], []>} : vector<64x32xbf16>, vector<32x128xbf16>, vector<64x128xf32> -> vector<64x128xf32>
    %75 = arith.addf %63, %74 : vector<64x128xf32>
    %76 = vector.extract_strided_slice %0 {offsets = [0, 6], sizes = [64, 1], strides = [1, 1]} : vector<64x7xi32> to vector<64x1xi32>
    %77 = vector.broadcast %76 : vector<64x1xi32> to vector<64x256xi32>
    %78 = arith.cmpi eq, %77, %2 : vector<64x256xi32>
    %79 = arith.extui %78 : vector<64x256xi1> to vector<64x256xi32>
    %80 = arith.sitofp %79 : vector<64x256xi32> to vector<64x256xf32>
    %81 = arith.truncf %80 : vector<64x256xf32> to vector<64x256xbf16>
    %cst_28 = arith.constant dense<0.000000e+00> : vector<64x32xf32>
    %82 = tpu.matmul %81, %1, %cst_28 {dimension_numbers = #tpu.dot_dimension_numbers<[1], [0], [0], [1], [0, 0, 1, 1], [], []>} : vector<64x256xbf16>, vector<256x32xbf16>, vector<64x32xf32> -> vector<64x32xf32>
    %83 = arith.truncf %82 : vector<64x32xf32> to vector<64x32xbf16>
    %c6 = arith.constant 6 : index
    %c0_29 = arith.constant 0 : index
    %c0_30 = arith.constant 0 : index
    %84 = vector.load %arg3[%c6, %c0_29, %c0_30] : memref<7x32x128xbf16, #tpu.memory_space<vmem>>, vector<1x32x128xbf16>
    %85 = vector.shape_cast %84 : vector<1x32x128xbf16> to vector<32x128xbf16>
    %cst_31 = arith.constant dense<0.000000e+00> : vector<64x128xf32>
    %86 = tpu.matmul %83, %85, %cst_31 {dimension_numbers = #tpu.dot_dimension_numbers<[1], [0], [0], [1], [0, 0, 1, 1], [], []>} : vector<64x32xbf16>, vector<32x128xbf16>, vector<64x128xf32> -> vector<64x128xf32>
    %87 = arith.addf %75, %86 : vector<64x128xf32>
    %c0_32 = arith.constant 0 : index
    %c0_33 = arith.constant 0 : index
    %88 = vector.load %arg4[%c0_32, %c0_33] : memref<1x128xf32, #tpu.memory_space<vmem>>, vector<1x128xf32>
    %89 = vector.broadcast %88 : vector<1x128xf32> to vector<64x128xf32>
    %90 = arith.addf %87, %89 : vector<64x128xf32>
    %91 = math.tanh %90 : vector<64x128xf32>
    %92 = arith.truncf %91 : vector<64x128xf32> to vector<64x128xbf16>
    %c0_34 = arith.constant 0 : index
    %c0_35 = arith.constant 0 : index
    %93 = vector.load %arg5[%c0_34, %c0_35] : memref<128x256xbf16, #tpu.memory_space<vmem>>, vector<128x256xbf16>
    %cst_36 = arith.constant dense<0.000000e+00> : vector<64x256xf32>
    %94 = tpu.matmul %92, %93, %cst_36 {dimension_numbers = #tpu.dot_dimension_numbers<[1], [0], [0], [1], [0, 0, 1, 1], [], []>} : vector<64x128xbf16>, vector<128x256xbf16>, vector<64x256xf32> -> vector<64x256xf32>
    %c0_37 = arith.constant 0 : index
    %c0_38 = arith.constant 0 : index
    %95 = vector.load %arg6[%c0_37, %c0_38] : memref<1x256xf32, #tpu.memory_space<vmem>>, vector<1x256xf32>
    %96 = vector.broadcast %95 : vector<1x256xf32> to vector<64x256xf32>
    %97 = arith.addf %94, %96 : vector<64x256xf32>
    %cst_39 = arith.constant dense<0xFF800000> : vector<64xf32>
    %98 = vector.multi_reduction <maximumf>, %97, %cst_39 [1] : vector<64x256xf32> to vector<64xf32>
    %99 = vector.shape_cast %98 : vector<64xf32> to vector<64x1xf32>
    %100 = vector.broadcast %99 : vector<64x1xf32> to vector<64x256xf32>
    %101 = arith.subf %97, %100 : vector<64x256xf32>
    %102 = math.exp %101 : vector<64x256xf32>
    %cst_40 = arith.constant dense<0.000000e+00> : vector<64xf32>
    %103 = vector.multi_reduction <add>, %102, %cst_40 [1] : vector<64x256xf32> to vector<64xf32>
    %104 = vector.shape_cast %103 : vector<64xf32> to vector<64x1xf32>
    %105 = math.log %104 : vector<64x1xf32>
    %106 = vector.broadcast %105 : vector<64x1xf32> to vector<64x256xf32>
    %107 = arith.subf %101, %106 : vector<64x256xf32>
    %c0_41 = arith.constant 0 : index
    %c0_42 = arith.constant 0 : index
    %108 = vector.load %arg7[%c0_41, %c0_42] : memref<64x256xf32, #tpu.memory_space<vmem>>, vector<64x256xf32>
    tpu.vector_store %arg7[%c0_41, %c0_42], %107 {strides = array<i32>} : memref<64x256xf32, #tpu.memory_space<vmem>>, vector<64x256xf32>,
    return
  }
  func.func @transform_0(%arg0: i32) -> (i32, i32) {
    %c0_i32 = arith.constant 0 : i32
    %c0_i32_0 = arith.constant 0 : i32
    return %arg0, %c0_i32 : i32, i32
  }
  func.func @transform_1(%arg0: i32) -> (i32, i32) {
    %c0_i32 = arith.constant 0 : i32
    %c0_i32_0 = arith.constant 0 : i32
    %c0_i32_1 = arith.constant 0 : i32
    return %c0_i32, %c0_i32_0 : i32, i32
  }
  func.func @transform_2(%arg0: i32) -> (i32, i32, i32) {
    %c0_i32 = arith.constant 0 : i32
    %c0_i32_0 = arith.constant 0 : i32
    %c0_i32_1 = arith.constant 0 : i32
    %c0_i32_2 = arith.constant 0 : i32
    return %c0_i32, %c0_i32_0, %c0_i32_1 : i32, i32, i32
  }
  func.func @transform_3(%arg0: i32) -> (i32, i32) {
    %c0_i32 = arith.constant 0 : i32
    %c0_i32_0 = arith.constant 0 : i32
    %c0_i32_1 = arith.constant 0 : i32
    return %c0_i32, %c0_i32_0 : i32, i32
  }
  func.func @transform_4(%arg0: i32) -> (i32, i32) {
    %c0_i32 = arith.constant 0 : i32
    %c0_i32_0 = arith.constant 0 : i32
    %c0_i32_1 = arith.constant 0 : i32
    return %c0_i32, %c0_i32_0 : i32, i32
  }
  func.func @transform_5(%arg0: i32) -> (i32, i32) {
    %c0_i32 = arith.constant 0 : i32
    %c0_i32_0 = arith.constant 0 : i32
    %c0_i32_1 = arith.constant 0 : i32
    return %c0_i32, %c0_i32_0 : i32, i32
  }
  func.func @transform_6(%arg0: i32) -> (i32, i32) {
    %c0_i32 = arith.constant 0 : i32
    %c0_i32_0 = arith.constant 0 : i32
    return %arg0, %c0_i32 : i32, i32
  }
}

</mosaic_0001>

<llo_original>
// kernel: _lambda_.1
$region0: #{_lambda_.1}
  #allocation0 [shape = 'u32[]', space=smem, size = 0x4, offset = 0x4, fixed_abs, tag = 'smem constant byte address 0x4 - core index']
  #allocation1 [shape = 'u32[144,128]{1,0:T(1,128)}', space=vmem, size = 0x12000, scoped, tag = 'internal scratch']
  %s0 = inlined_call_operand.vmem [shape: s32[64,7], index: 0, kind: input, shape index: {}]
  %s1 = inlined_call_operand.vmem [shape: bf16[256,32], index: 1, kind: input, shape index: {}]
  %s2 = inlined_call_operand.vmem [shape: bf16[7,32,128], index: 2, kind: input, shape index: {}]
  %s3 = inlined_call_operand.vmem [shape: f32[1,128], index: 3, kind: input, shape index: {}]
  %s4 = inlined_call_operand.vmem [shape: bf16[128,256], index: 4, kind: input, shape index: {}]
  %s5 = inlined_call_operand.vmem [shape: f32[1,256], index: 5, kind: input, shape index: {}]
  %s6 = inlined_call_operand.hbm [shape: f32[64,256], index: 6, kind: output, shape index: {}]
  %s7 = sld [smem:[#allocation0]]
  $region34: #{_lambda_.1} parent=0
    _
  %s9 = ssub.s32 1, %s7
  %s10 = scalar_select 0, %s9, %s7
  $region1: #{_lambda_.1} parent=0
    #allocation2 [shape = 'u8[65536]{0}', space=vmem, size = 0x10000, scoped, tag = 'output window, operand 0, single buffered']
    #allocation3 [shape = 's32[1]{0}', space=sflag, size = 0x4, scoped, tag = 'scoped memory for _lambda_.1']
    %11 = vsyncpa [#allocation3], 0
    // Predicated region
    $region2: #{_lambda_.1} parent=1 // pred_check
      _
    $region3: #{_lambda_.1} parent=1 // pred_check_branch
      %13 = sbr.rel (0) target = $region5
    $region4: #{_lambda_.1} parent=1 // pred_region
      _
    $region5: #{_lambda_.1} parent=1 // pred_fallthru
      _
    // Predicated region
    $region6: #{_lambda_.1} parent=1 // pred_check
      _
    $region7: #{_lambda_.1} parent=1 // pred_check_branch
      %15 = sbr.rel (0) target = $region9
    $region8: #{_lambda_.1} parent=1 // pred_region
      _
    $region9: #{_lambda_.1} parent=1 // pred_fallthru
      _
    // Predicated region
    $region10: #{_lambda_.1} parent=1 // pred_check
      _
    $region11: #{_lambda_.1} parent=1 // pred_check_branch
      %17 = sbr.rel (0) target = $region13
    $region12: #{_lambda_.1} parent=1 // pred_region
      _
    $region13: #{_lambda_.1} parent=1 // pred_fallthru
      _
    // Predicated region
    $region14: #{_lambda_.1} parent=1 // pred_check
      _
    $region15: #{_lambda_.1} parent=1 // pred_check_branch
      %19 = sbr.rel (0) target = $region17
    $region16: #{_lambda_.1} parent=1 // pred_region
      _
    $region17: #{_lambda_.1} parent=1 // pred_fallthru
      _
    // Predicated region
    $region18: #{_lambda_.1} parent=1 // pred_check
      _
    $region19: #{_lambda_.1} parent=1 // pred_check_branch
      %21 = sbr.rel (0) target = $region21
    $region20: #{_lambda_.1} parent=1 // pred_region
      _
    $region21: #{_lambda_.1} parent=1 // pred_fallthru
      _
    // Predicated region
    $region22: #{_lambda_.1} parent=1 // pred_check
      _
    $region23: #{_lambda_.1} parent=1 // pred_check_branch
      %23 = sbr.rel (0) target = $region25
    $region24: #{_lambda_.1} parent=1 // pred_region
      _
    $region25: #{_lambda_.1} parent=1 // pred_fallthru
      _
    %v25 = vld [vmem:[%s0] sm:$0xff]
    %v26 = vld [vmem:[%s0 + $0x8] sm:$0xff]
    %v27 = vld [vmem:[%s0 + $0x10] sm:$0xff]
    %v28 = vld [vmem:[%s0 + $0x18] sm:$0xff]
    %v29 = vld [vmem:[%s0 + $0x20] sm:$0xff]
    %v30 = vld [vmem:[%s0 + $0x28] sm:$0xff]
    %v31 = vld [vmem:[%s0 + $0x30] sm:$0xff]
    %v32 = vld [vmem:[%s0 + $0x38] sm:$0xff]
    %v33 = vld [vmem:[%s1] sm:$0xf]
    %v34 = vld [vmem:[%s1 + $0x4] sm:$0xf]
    %v35 = vld [vmem:[%s1 + $0x8] sm:$0xf]
    %v36 = vld [vmem:[%s1 + $0xc] sm:$0xf]
    %v37 = vld [vmem:[%s1 + $0x10] sm:$0xf]
    %v38 = vld [vmem:[%s1 + $0x14] sm:$0xf]
    %v39 = vld [vmem:[%s1 + $0x18] sm:$0xf]
    %v40 = vld [vmem:[%s1 + $0x1c] sm:$0xf]
    %v41 = vld [vmem:[%s1 + $0x20] sm:$0xf]
    %v42 = vld [vmem:[%s1 + $0x24] sm:$0xf]
    %v43 = vld [vmem:[%s1 + $0x28] sm:$0xf]
    %v44 = vld [vmem:[%s1 + $0x2c] sm:$0xf]
    %v45 = vld [vmem:[%s1 + $0x30] sm:$0xf]
    %v46 = vld [vmem:[%s1 + $0x34] sm:$0xf]
    %v47 = vld [vmem:[%s1 + $0x38] sm:$0xf]
    %v48 = vld [vmem:[%s1 + $0x3c] sm:$0xf]
    %v49 = vld [vmem:[%s1 + $0x40] sm:$0xf]
    %v50 = vld [vmem:[%s1 + $0x44] sm:$0xf]
    %v51 = vld [vmem:[%s1 + $0x48] sm:$0xf]
    %v52 = vld [vmem:[%s1 + $0x4c] sm:$0xf]
    %v53 = vld [vmem:[%s1 + $0x50] sm:$0xf]
    %v54 = vld [vmem:[%s1 + $0x54] sm:$0xf]
    %v55 = vld [vmem:[%s1 + $0x58] sm:$0xf]
    %v56 = vld [vmem:[%s1 + $0x5c] sm:$0xf]
    %v57 = vld [vmem:[%s1 + $0x60] sm:$0xf]
    %v58 = vld [vmem:[%s1 + $0x64] sm:$0xf]
    %v59 = vld [vmem:[%s1 + $0x68] sm:$0xf]
    %v60 = vld [vmem:[%s1 + $0x6c] sm:$0xf]
    %v61 = vld [vmem:[%s1 + $0x70] sm:$0xf]
    %v62 = vld [vmem:[%s1 + $0x74] sm:$0xf]
    %v63 = vld [vmem:[%s1 + $0x78] sm:$0xf]
    %v64 = vld [vmem:[%s1 + $0x7c] sm:$0xf]
    %v65 = vlaneseq
    %v66 = vand.u32 %v65, 127
    %v67 = vadd.s32 %v66, 128
    %68 = vset.pattern.permute.xlu0 0
    %69 = vperm.xlu0 %68, %v25
    %v70 = vpop.permute.xlu0 %69
    %71 = vset.pattern.permute.xlu0 0
    %72 = vperm.xlu0 %71, %v26
    %v73 = vpop.permute.xlu0 %72
    %74 = vset.pattern.permute.xlu0 0
    %75 = vperm.xlu0 %74, %v27
    %v76 = vpop.permute.xlu0 %75
    %77 = vset.pattern.permute.xlu0 0
    %78 = vperm.xlu0 %77, %v28
    %v79 = vpop.permute.xlu0 %78
    %80 = vset.pattern.permute.xlu0 0
    %81 = vperm.xlu0 %80, %v29
    %v82 = vpop.permute.xlu0 %81
    %83 = vset.pattern.permute.xlu0 0
    %84 = vperm.xlu0 %83, %v30
    %v85 = vpop.permute.xlu0 %84
    %86 = vset.pattern.permute.xlu0 0
    %87 = vperm.xlu0 %86, %v31
    %v88 = vpop.permute.xlu0 %87
    %89 = vset.pattern.permute.xlu0 0
    %90 = vperm.xlu0 %89, %v32
    %v91 = vpop.permute.xlu0 %90
    %vm92 = vcmp.eq.s32.totalorder %v70, %v66
    %vm93 = vcmp.eq.s32.totalorder %v70, %v67
    %vm94 = vcmp.eq.s32.totalorder %v73, %v66
    %vm95 = vcmp.eq.s32.totalorder %v73, %v67
    %vm96 = vcmp.eq.s32.totalorder %v76, %v66
    %vm97 = vcmp.eq.s32.totalorder %v76, %v67
    %vm98 = vcmp.eq.s32.totalorder %v79, %v66
    %vm99 = vcmp.eq.s32.totalorder %v79, %v67
    %vm100 = vcmp.eq.s32.totalorder %v82, %v66
    %vm101 = vcmp.eq.s32.totalorder %v82, %v67
    %vm102 = vcmp.eq.s32.totalorder %v85, %v66
    %vm103 = vcmp.eq.s32.totalorder %v85, %v67
    %vm104 = vcmp.eq.s32.totalorder %v88, %v66
    %vm105 = vcmp.eq.s32.totalorder %v88, %v67
    %vm106 = vcmp.eq.s32.totalorder %v91, %v66
    %vm107 = vcmp.eq.s32.totalorder %v91, %v67
    %v108 = vsel %vm92, 1, 0
    %v109 = vsel %vm93, 1, 0
    %v110 = vsel %vm94, 1, 0
    %v111 = vsel %vm95, 1, 0
    %v112 = vsel %vm96, 1, 0
    %v113 = vsel %vm97, 1, 0
    %v114 = vsel %vm98, 1, 0
    %v115 = vsel %vm99, 1, 0
    %v116 = vsel %vm100, 1, 0
    %v117 = vsel %vm101, 1, 0
    %v118 = vsel %vm102, 1, 0
    %v119 = vsel %vm103, 1, 0
    %v120 = vsel %vm104, 1, 0
    %v121 = vsel %vm105, 1, 0
    %v122 = vsel %vm106, 1, 0
    %v123 = vsel %vm107, 1, 0
    %v124 = vcvt.s32.f32 %v108
    %v125 = vcvt.s32.f32 %v109
    %v126 = vcvt.s32.f32 %v110
    %v127 = vcvt.s32.f32 %v111
    %v128 = vcvt.s32.f32 %v112
    %v129 = vcvt.s32.f32 %v113
    %v130 = vcvt.s32.f32 %v114
    %v131 = vcvt.s32.f32 %v115
    %v132 = vcvt.s32.f32 %v116
    %v133 = vcvt.s32.f32 %v117
    %v134 = vcvt.s32.f32 %v118
    %v135 = vcvt.s32.f32 %v119
    %v136 = vcvt.s32.f32 %v120
    %v137 = vcvt.s32.f32 %v121
    %v138 = vcvt.s32.f32 %v122
    %v139 = vcvt.s32.f32 %v123
    %v140 = vpack.c.bf16 %v126, %v124
    %v141 = vpack.c.bf16 %v127, %v125
    %v142 = vpack.c.bf16 %v130, %v128
    %v143 = vpack.c.bf16 %v131, %v129
    %v144 = vpack.c.bf16 %v134, %v132
    %v145 = vpack.c.bf16 %v135, %v133
    %v146 = vpack.c.bf16 %v138, %v136
    %v147 = vpack.c.bf16 %v139, %v137
    %v180 = vunpack.c.l.b16 %v33
    %v181 = vunpack.c.l.b16 %v34
    %v182 = vunpack.c.l.b16 %v35
    %v183 = vunpack.c.l.b16 %v36
    %v184 = vunpack.c.l.b16 %v37
    %v185 = vunpack.c.l.b16 %v38
    %v186 = vunpack.c.l.b16 %v39
    %v187 = vunpack.c.l.b16 %v40
    %v188 = vunpack.c.l.b16 %v41
    %v189 = vunpack.c.l.b16 %v42
    %v190 = vunpack.c.l.b16 %v43
    %v191 = vunpack.c.l.b16 %v44
    %v192 = vunpack.c.l.b16 %v45
    %v193 = vunpack.c.l.b16 %v46
    %v194 = vunpack.c.l.b16 %v47
    %v195 = vunpack.c.l.b16 %v48
    %v196 = vunpack.c.l.b16 %v49
    %v197 = vunpack.c.l.b16 %v50
    %v198 = vunpack.c.l.b16 %v51
    %v199 = vunpack.c.l.b16 %v52
    %v200 = vunpack.c.l.b16 %v53
    %v201 = vunpack.c.l.b16 %v54
    %v202 = vunpack.c.l.b16 %v55
    %v203 = vunpack.c.l.b16 %v56
    %v204 = vunpack.c.l.b16 %v57
    %v205 = vunpack.c.l.b16 %v58
    %v206 = vunpack.c.l.b16 %v59
    %v207 = vunpack.c.l.b16 %v60
    %v208 = vunpack.c.l.b16 %v61
    %v209 = vunpack.c.l.b16 %v62
    %v210 = vunpack.c.l.b16 %v63
    %v211 = vunpack.c.l.b16 %v64
    %v212 = vpack.c.b16 %v181, %v180
    %v213 = vpack.c.b16 %v183, %v182
    %v214 = vpack.c.b16 %v185, %v184
    %v215 = vpack.c.b16 %v187, %v186
    %v216 = vpack.c.b16 %v189, %v188
    %v217 = vpack.c.b16 %v191, %v190
    %v218 = vpack.c.b16 %v193, %v192
    %v219 = vpack.c.b16 %v195, %v194
    %v220 = vpack.c.b16 %v197, %v196
    %v221 = vpack.c.b16 %v199, %v198
    %v222 = vpack.c.b16 %v201, %v200
    %v223 = vpack.c.b16 %v203, %v202
    %v224 = vpack.c.b16 %v205, %v204
    %v225 = vpack.c.b16 %v207, %v206
    %v226 = vpack.c.b16 %v209, %v208
    %v227 = vpack.c.b16 %v211, %v210
    %244 = vmatprep.subr.bf16.mxu0 0
    %245 = vmatpush1.bf16.msra.mxu0 %v212
    %246 = vmatprep.subr.bf16.mxu0 0
    %247 = vmatpush1.bf16.msra.mxu0 %v213
    %248 = vmatprep.subr.bf16.mxu0 0
    %249 = vmatpush1.bf16.msra.mxu0 %v214
    %250 = vmatprep.subr.bf16.mxu0 0
    %251 = vmatpush1.bf16.msra.mxu0 %v215
    %252 = vmatprep.subr.bf16.mxu0 0
    %253 = vmatpush1.bf16.msra.mxu0 %v216
    %254 = vmatprep.subr.bf16.mxu0 0
    %255 = vmatpush1.bf16.msra.mxu0 %v217
    %256 = vmatprep.subr.bf16.mxu0 0
    %257 = vmatpush1.bf16.msra.mxu0 %v218
    %258 = vmatprep.subr.bf16.mxu0 0
    %259 = vmatpush1.bf16.msra.mxu0 %v219
    %260 = vmatprep.subr.bf16.mxu0 0
    %261 = vmatpush1.bf16.msra.mxu0 %v220
    %262 = vmatprep.subr.bf16.mxu0 0
    %263 = vmatpush1.bf16.msra.mxu0 %v221
    %264 = vmatprep.subr.bf16.mxu0 0
    %265 = vmatpush1.bf16.msra.mxu0 %v222
    %266 = vmatprep.subr.bf16.mxu0 0
    %267 = vmatpush1.bf16.msra.mxu0 %v223
    %268 = vmatprep.subr.bf16.mxu0 0
    %269 = vmatpush1.bf16.msra.mxu0 %v224
    %270 = vmatprep.subr.bf16.mxu0 0
    %271 = vmatpush1.bf16.msra.mxu0 %v225
    %272 = vmatprep.subr.bf16.mxu0 0
    %273 = vmatpush1.bf16.msra.mxu0 %v226
    %274 = vmatprep.subr.bf16.mxu0 0
    %275 = vmatpush1.bf16.msra.mxu0 %v227
    %276 = vmatprep.mubr.bf16.mxu0 %v141
    %277 = vmatmul.mubr.bf16.gmra.mrb[0].mxu0 %v140
    %v278 = vpop.f32.mrb[0].mxu0
    %v279 = vadd.f32 0.0, %v278
    %v280 = vpop.f32.mrb[0].mxu0
    %v281 = vpop.f32.mrb[0].mxu0
    %v282 = vadd.f32 0.0, %v281
    %v283 = vpop.f32.mrb[0].mxu0
    %284 = vmatprep.mubr.bf16.mxu0 %v143
    %285 = vmatmul.mubr.bf16.gmra.mrb[0].mxu0 %v142
    %v286 = vpop.f32.mrb[0].mxu0
    %v287 = vadd.f32 0.0, %v286
    %v288 = vpop.f32.mrb[0].mxu0
    %v289 = vpop.f32.mrb[0].mxu0
    %v290 = vadd.f32 0.0, %v289
    %v291 = vpop.f32.mrb[0].mxu0
    %292 = vmatprep.mubr.bf16.mxu0 %v145
    %293 = vmatmul.mubr.bf16.gmra.mrb[0].mxu0 %v144
    %v294 = vpop.f32.mrb[0].mxu0
    %v295 = vadd.f32 0.0, %v294
    %v296 = vpop.f32.mrb[0].mxu0
    %v297 = vpop.f32.mrb[0].mxu0
    %v298 = vadd.f32 0.0, %v297
    %v299 = vpop.f32.mrb[0].mxu0
    %300 = vmatprep.mubr.bf16.mxu0 %v147
    %301 = vmatmul.mubr.bf16.gmra.mrb[0].mxu0 %v146
    %v302 = vpop.f32.mrb[0].mxu0
    %v303 = vadd.f32 0.0, %v302
    %v304 = vpop.f32.mrb[0].mxu0
    %v305 = vpop.f32.mrb[0].mxu0
    %v306 = vadd.f32 0.0, %v305
    %v307 = vpop.f32.mrb[0].mxu0
    %308 = vdwg.mxu0
    %v309 = vpack.c.bf16 %v282, %v279
    %v310 = vpack.c.bf16 %v290, %v287
    %v311 = vpack.c.bf16 %v298, %v295
    %v312 = vpack.c.bf16 %v306, %v303
    %v313 = vld [vmem:[%s2] sm:$0xf]
    %v314 = vld [vmem:[%s2 + $0x4] sm:$0xf]
    %v315 = vld [vmem:[%s2 + $0x8] sm:$0xf]
    %v316 = vld [vmem:[%s2 + $0xc] sm:$0xf]
    %317 = vset.pattern.permute.xlu0 1
    %318 = vperm.xlu0 %317, %v25
    %v319 = vpop.permute.xlu0 %318
    %320 = vset.pattern.permute.xlu0 1
    %321 = vperm.xlu0 %320, %v26
    %v322 = vpop.permute.xlu0 %321
    %323 = vset.pattern.permute.xlu0 1
    %324 = vperm.xlu0 %323, %v27
    %v325 = vpop.permute.xlu0 %324
    %326 = vset.pattern.permute.xlu0 1
    %327 = vperm.xlu0 %326, %v28
    %v328 = vpop.permute.xlu0 %327
    %329 = vset.pattern.permute.xlu0 1
    %330 = vperm.xlu0 %329, %v29
    %v331 = vpop.permute.xlu0 %330
    %332 = vset.pattern.permute.xlu0 1
    %333 = vperm.xlu0 %332, %v30
    %v334 = vpop.permute.xlu0 %333
    %335 = vset.pattern.permute.xlu0 1
    %336 = vperm.xlu0 %335, %v31
    %v337 = vpop.permute.xlu0 %336
    %338 = vset.pattern.permute.xlu0 1
    %339 = vperm.xlu0 %338, %v32
    %v340 = vpop.permute.xlu0 %339
    %vm341 = vcmp.eq.s32.totalorder %v319, %v66
    %vm342 = vcmp.eq.s32.totalorder %v319, %v67
    %vm343 = vcmp.eq.s32.totalorder %v322, %v66
    %vm344 = vcmp.eq.s32.totalorder %v322, %v67
    %vm345 = vcmp.eq.s32.totalorder %v325, %v66
    %vm346 = vcmp.eq.s32.totalorder %v325, %v67
    %vm347 = vcmp.eq.s32.totalorder %v328, %v66
    %vm348 = vcmp.eq.s32.totalorder %v328, %v67
    %vm349 = vcmp.eq.s32.totalorder %v331, %v66
    %vm350 = vcmp.eq.s32.totalorder %v331, %v67
    %vm351 = vcmp.eq.s32.totalorder %v334, %v66
    %vm352 = vcmp.eq.s32.totalorder %v334, %v67
    %vm353 = vcmp.eq.s32.totalorder %v337, %v66
    %vm354 = vcmp.eq.s32.totalorder %v337, %v67
    %vm355 = vcmp.eq.s32.totalorder %v340, %v66
    %vm356 = vcmp.eq.s32.totalorder %v340, %v67
    %v357 = vsel %vm341, 1, 0
    %v358 = vsel %vm342, 1, 0
    %v359 = vsel %vm343, 1, 0
    %v360 = vsel %vm344, 1, 0
    %v361 = vsel %vm345, 1, 0
    %v362 = vsel %vm346, 1, 0
    %v363 = vsel %vm347, 1, 0
    %v364 = vsel %vm348, 1, 0
    %v365 = vsel %vm349, 1, 0
    %v366 = vsel %vm350, 1, 0
    %v367 = vsel %vm351, 1, 0
    %v368 = vsel %vm352, 1, 0
    %v369 = vsel %vm353, 1, 0
    %v370 = vsel %vm354, 1, 0
    %v371 = vsel %vm355, 1, 0
    %v372 = vsel %vm356, 1, 0
    %v373 = vcvt.s32.f32 %v357
    %v374 = vcvt.s32.f32 %v358
    %v375 = vcvt.s32.f32 %v359
    %v376 = vcvt.s32.f32 %v360
    %v377 = vcvt.s32.f32 %v361
    %v378 = vcvt.s32.f32 %v362
    %v379 = vcvt.s32.f32 %v363
    %v380 = vcvt.s32.f32 %v364
    %v381 = vcvt.s32.f32 %v365
    %v382 = vcvt.s32.f32 %v366
    %v383 = vcvt.s32.f32 %v367
    %v384 = vcvt.s32.f32 %v368
    %v385 = vcvt.s32.f32 %v369
    %v386 = vcvt.s32.f32 %v370
    %v387 = vcvt.s32.f32 %v371
    %v388 = vcvt.s32.f32 %v372
    %v389 = vpack.c.bf16 %v375, %v373
    %v390 = vpack.c.bf16 %v376, %v374
    %v391 = vpack.c.bf16 %v379, %v377
    %v392 = vpack.c.bf16 %v380, %v378
    %v393 = vpack.c.bf16 %v383, %v381
    %v394 = vpack.c.bf16 %v384, %v382
    %v395 = vpack.c.bf16 %v387, %v385
    %v396 = vpack.c.bf16 %v388, %v386
    %397 = vmatprep.subr.bf16.mxu0 0
    %398 = vmatpush1.bf16.msra.mxu0 %v212
    %399 = vmatprep.subr.bf16.mxu0 0
    %400 = vmatpush1.bf16.msra.mxu0 %v213
    %401 = vmatprep.subr.bf16.mxu0 0
    %402 = vmatpush1.bf16.msra.mxu0 %v214
    %403 = vmatprep.subr.bf16.mxu0 0
    %404 = vmatpush1.bf16.msra.mxu0 %v215
    %405 = vmatprep.subr.bf16.mxu0 0
    %406 = vmatpush1.bf16.msra.mxu0 %v216
    %407 = vmatprep.subr.bf16.mxu0 0
    %408 = vmatpush1.bf16.msra.mxu0 %v217
    %409 = vmatprep.subr.bf16.mxu0 0
    %410 = vmatpush1.bf16.msra.mxu0 %v218
    %411 = vmatprep.subr.bf16.mxu0 0
    %412 = vmatpush1.bf16.msra.mxu0 %v219
    %413 = vmatprep.subr.bf16.mxu0 0
    %414 = vmatpush1.bf16.msra.mxu0 %v220
    %415 = vmatprep.subr.bf16.mxu0 0
    %416 = vmatpush1.bf16.msra.mxu0 %v221
    %417 = vmatprep.subr.bf16.mxu0 0
    %418 = vmatpush1.bf16.msra.mxu0 %v222
    %419 = vmatprep.subr.bf16.mxu0 0
    %420 = vmatpush1.bf16.msra.mxu0 %v223
    %421 = vmatprep.subr.bf16.mxu0 0
    %422 = vmatpush1.bf16.msra.mxu0 %v224
    %423 = vmatprep.subr.bf16.mxu0 0
    %424 = vmatpush1.bf16.msra.mxu0 %v225
    %425 = vmatprep.subr.bf16.mxu0 0
    %426 = vmatpush1.bf16.msra.mxu0 %v226
    %427 = vmatprep.subr.bf16.mxu0 0
    %428 = vmatpush1.bf16.msra.mxu0 %v227
    %429 = vmatprep.mubr.bf16.mxu0 %v390
    %430 = vmatmul.mubr.bf16.gmra.mrb[0].mxu0 %v389
    %v431 = vpop.f32.mrb[0].mxu0
    %v432 = vadd.f32 0.0, %v431
    %v433 = vpop.f32.mrb[0].mxu0
    %v434 = vpop.f32.mrb[0].mxu0
    %v435 = vadd.f32 0.0, %v434
    %v436 = vpop.f32.mrb[0].mxu0
    %437 = vmatprep.mubr.bf16.mxu0 %v392
    %438 = vmatmul.mubr.bf16.gmra.mrb[0].mxu0 %v391
    %v439 = vpop.f32.mrb[0].mxu0
    %v440 = vadd.f32 0.0, %v439
    %v441 = vpop.f32.mrb[0].mxu0
    %v442 = vpop.f32.mrb[0].mxu0
    %v443 = vadd.f32 0.0, %v442
    %v444 = vpop.f32.mrb[0].mxu0
    %445 = vmatprep.mubr.bf16.mxu0 %v394
    %446 = vmatmul.mubr.bf16.gmra.mrb[0].mxu0 %v393
    %v447 = vpop.f32.mrb[0].mxu0
    %v448 = vadd.f32 0.0, %v447
    %v449 = vpop.f32.mrb[0].mxu0
    %v450 = vpop.f32.mrb[0].mxu0
    %v451 = vadd.f32 0.0, %v450
    %v452 = vpop.f32.mrb[0].mxu0
    %453 = vmatprep.mubr.bf16.mxu0 %v396
    %454 = vmatmul.mubr.bf16.gmra.mrb[0].mxu0 %v395
    %v455 = vpop.f32.mrb[0].mxu0
    %v456 = vadd.f32 0.0, %v455
    %v457 = vpop.f32.mrb[0].mxu0
    %v458 = vpop.f32.mrb[0].mxu0
    %v459 = vadd.f32 0.0, %v458
    %v460 = vpop.f32.mrb[0].mxu0
    %461 = vdwg.mxu0
    %v462 = vpack.c.bf16 %v435, %v432
    %v463 = vpack.c.bf16 %v443, %v440
    %v464 = vpack.c.bf16 %v451, %v448
    %v465 = vpack.c.bf16 %v459, %v456
    %s466 = scalar_lea.vmem %s2, 16
    %v467 = vld [vmem:[%s466] sm:$0xf]
    %v468 = vld [vmem:[%s466 + $0x4] sm:$0xf]
    %v469 = vld [vmem:[%s466 + $0x8] sm:$0xf]
    %v470 = vld [vmem:[%s466 + $0xc] sm:$0xf]
    %v475 = vunpack.c.l.b16 %v467
    %v476 = vunpack.c.l.b16 %v468
    %v477 = vunpack.c.l.b16 %v469
    %v478 = vunpack.c.l.b16 %v470
    %v479 = vpack.c.b16 %v476, %v475
    %v480 = vpack.c.b16 %v478, %v477
    %vm483 = vcmask 261120
    %v485 = vsel %vm483, %v462, 0
    %v488 = vsel %vm483, %v463, 0
    %v491 = vsel %vm483, %v464, 0
    %v494 = vsel %vm483, %v465, 0
    %496 = vmatprep.subr.bf16.mxu0 0
    %497 = vmatpush1.bf16.msra.mxu0 %v479
    %498 = vmatprep.subr.bf16.mxu0 0
    %499 = vmatpush1.bf16.msra.mxu0 %v480
    %500 = vmatprep.subr.bf16.mxu0 0
    %501 = vmatpush1.bf16.msra.mxu0 0
    %502 = vmatprep.subr.bf16.mxu0 0
    %503 = vmatpush1.bf16.msra.mxu0 0
    %504 = vmatprep.subr.bf16.mxu0 0
    %505 = vmatpush1.bf16.msra.mxu0 0
    %506 = vmatprep.subr.bf16.mxu0 0
    %507 = vmatpush1.bf16.msra.mxu0 0
    %508 = vmatprep.subr.bf16.mxu0 0
    %509 = vmatpush1.bf16.msra.mxu0 0
    %510 = vmatprep.subr.bf16.mxu0 0
    %511 = vmatpush1.bf16.msra.mxu0 0
    %512 = vmatprep.subr.bf16.mxu0 0
    %513 = vmatpush1.bf16.msra.mxu0 0
    %514 = vmatprep.subr.bf16.mxu0 0
    %515 = vmatpush1.bf16.msra.mxu0 0
    %516 = vmatprep.subr.bf16.mxu0 0
    %517 = vmatpush1.bf16.msra.mxu0 0
    %518 = vmatprep.subr.bf16.mxu0 0
    %519 = vmatpush1.bf16.msra.mxu0 0
    %520 = vmatprep.subr.bf16.mxu0 0
    %521 = vmatpush1.bf16.msra.mxu0 0
    %522 = vmatprep.subr.bf16.mxu0 0
    %523 = vmatpush1.bf16.msra.mxu0 0
    %524 = vmatprep.subr.bf16.mxu0 0
    %525 = vmatpush1.bf16.msra.mxu0 0
    %526 = vmatprep.subr.bf16.mxu0 0
    %527 = vmatpush1.bf16.msra.mxu0 0
    %528 = vmatprep.mubr.bf16.mxu0 0
    %529 = vmatmul.mubr.bf16.gmra.mrb[0].mxu0 %v485
    %v530 = vpop.f32.mrb[0].mxu0
    %v531 = vadd.f32 0.0, %v530
    %v532 = vpop.f32.mrb[0].mxu0
    %v533 = vpop.f32.mrb[0].mxu0
    %v534 = vadd.f32 0.0, %v533
    %v535 = vpop.f32.mrb[0].mxu0
    %536 = vmatprep.mubr.bf16.mxu0 0
    %537 = vmatmul.mubr.bf16.gmra.mrb[0].mxu0 %v488
    %v538 = vpop.f32.mrb[0].mxu0
    %v539 = vadd.f32 0.0, %v538
    %v540 = vpop.f32.mrb[0].mxu0
    %v541 = vpop.f32.mrb[0].mxu0
    %v542 = vadd.f32 0.0, %v541
    %v543 = vpop.f32.mrb[0].mxu0
    %544 = vmatprep.mubr.bf16.mxu0 0
    %545 = vmatmul.mubr.bf16.gmra.mrb[0].mxu0 %v491
    %v546 = vpop.f32.mrb[0].mxu0
    %v547 = vadd.f32 0.0, %v546
    %v548 = vpop.f32.mrb[0].mxu0
    %v549 = vpop.f32.mrb[0].mxu0
    %v550 = vadd.f32 0.0, %v549
    %v551 = vpop.f32.mrb[0].mxu0
    %552 = vmatprep.mubr.bf16.mxu0 0
    %553 = vmatmul.mubr.bf16.gmra.mrb[0].mxu0 %v494
    %v554 = vpop.f32.mrb[0].mxu0
    %v555 = vadd.f32 0.0, %v554
    %v556 = vpop.f32.mrb[0].mxu0
    %v557 = vpop.f32.mrb[0].mxu0
    %v558 = vadd.f32 0.0, %v557
    %v559 = vpop.f32.mrb[0].mxu0
    %560 = vdwg.mxu0
    %v565 = vunpack.c.l.b16 %v313
    %v566 = vunpack.c.l.b16 %v314
    %v567 = vunpack.c.l.b16 %v315
    %v568 = vunpack.c.l.b16 %v316
    %v569 = vpack.c.b16 %v566, %v565
    %v570 = vpack.c.b16 %v568, %v567
    %v574 = vsel %vm483, %v309, 0
    %v577 = vsel %vm483, %v310, 0
    %v580 = vsel %vm483, %v311, 0
    %v583 = vsel %vm483, %v312, 0
    %585 = vmatprep.subr.bf16.mxu0 0
    %586 = vmatpush1.bf16.msra.mxu0 %v569
    %587 = vmatprep.subr.bf16.mxu0 0
    %588 = vmatpush1.bf16.msra.mxu0 %v570
    %589 = vmatprep.subr.bf16.mxu0 0
    %590 = vmatpush1.bf16.msra.mxu0 0
    %591 = vmatprep.subr.bf16.mxu0 0
    %592 = vmatpush1.bf16.msra.mxu0 0
    %593 = vmatprep.subr.bf16.mxu0 0
    %594 = vmatpush1.bf16.msra.mxu0 0
    %595 = vmatprep.subr.bf16.mxu0 0
    %596 = vmatpush1.bf16.msra.mxu0 0
    %597 = vmatprep.subr.bf16.mxu0 0
    %598 = vmatpush1.bf16.msra.mxu0 0
    %599 = vmatprep.subr.bf16.mxu0 0
    %600 = vmatpush1.bf16.msra.mxu0 0
    %601 = vmatprep.subr.bf16.mxu0 0
    %602 = vmatpush1.bf16.msra.mxu0 0
    %603 = vmatprep.subr.bf16.mxu0 0
    %604 = vmatpush1.bf16.msra.mxu0 0
    %605 = vmatprep.subr.bf16.mxu0 0
    %606 = vmatpush1.bf16.msra.mxu0 0
    %607 = vmatprep.subr.bf16.mxu0 0
    %608 = vmatpush1.bf16.msra.mxu0 0
    %609 = vmatprep.subr.bf16.mxu0 0
    %610 = vmatpush1.bf16.msra.mxu0 0
    %611 = vmatprep.subr.bf16.mxu0 0
    %612 = vmatpush1.bf16.msra.mxu0 0
    %613 = vmatprep.subr.bf16.mxu0 0
    %614 = vmatpush1.bf16.msra.mxu0 0
    %615 = vmatprep.subr.bf16.mxu0 0
    %616 = vmatpush1.bf16.msra.mxu0 0
    %617 = vmatprep.mubr.bf16.mxu0 0
    %618 = vmatmul.mubr.bf16.gmra.mrb[0].mxu0 %v574
    %v619 = vpop.f32.mrb[0].mxu0
    %v620 = vadd.f32 %v531, %v619
    %v621 = vpop.f32.mrb[0].mxu0
    %v622 = vpop.f32.mrb[0].mxu0
    %v623 = vadd.f32 %v534, %v622
    %v624 = vpop.f32.mrb[0].mxu0
    %625 = vmatprep.mubr.bf16.mxu0 0
    %626 = vmatmul.mubr.bf16.gmra.mrb[0].mxu0 %v577
    %v627 = vpop.f32.mrb[0].mxu0
    %v628 = vadd.f32 %v539, %v627
    %v629 = vpop.f32.mrb[0].mxu0
    %v630 = vpop.f32.mrb[0].mxu0
    %v631 = vadd.f32 %v542, %v630
    %v632 = vpop.f32.mrb[0].mxu0
    %633 = vmatprep.mubr.bf16.mxu0 0
    %634 = vmatmul.mubr.bf16.gmra.mrb[0].mxu0 %v580
    %v635 = vpop.f32.mrb[0].mxu0
    %v636 = vadd.f32 %v547, %v635
    %v637 = vpop.f32.mrb[0].mxu0
    %v638 = vpop.f32.mrb[0].mxu0
    %v639 = vadd.f32 %v550, %v638
    %v640 = vpop.f32.mrb[0].mxu0
    %641 = vmatprep.mubr.bf16.mxu0 0
    %642 = vmatmul.mubr.bf16.gmra.mrb[0].mxu0 %v583
    %v643 = vpop.f32.mrb[0].mxu0
    %v644 = vadd.f32 %v555, %v643
    %v645 = vpop.f32.mrb[0].mxu0
    %v646 = vpop.f32.mrb[0].mxu0
    %v647 = vadd.f32 %v558, %v646
    %v648 = vpop.f32.mrb[0].mxu0
    %649 = vdwg.mxu0
    %650 = vset.pattern.permute.xlu0 2
    %651 = vperm.xlu0 %650, %v25
    %v652 = vpop.permute.xlu0 %651
    %653 = vset.pattern.permute.xlu0 2
    %654 = vperm.xlu0 %653, %v26
    %v655 = vpop.permute.xlu0 %654
    %656 = vset.pattern.permute.xlu0 2
    %657 = vperm.xlu0 %656, %v27
    %v658 = vpop.permute.xlu0 %657
    %659 = vset.pattern.permute.xlu0 2
    %660 = vperm.xlu0 %659, %v28
    %v661 = vpop.permute.xlu0 %660
    %662 = vset.pattern.permute.xlu0 2
    %663 = vperm.xlu0 %662, %v29
    %v664 = vpop.permute.xlu0 %663
    %665 = vset.pattern.permute.xlu0 2
    %666 = vperm.xlu0 %665, %v30
    %v667 = vpop.permute.xlu0 %666
    %668 = vset.pattern.permute.xlu0 2
    %669 = vperm.xlu0 %668, %v31
    %v670 = vpop.permute.xlu0 %669
    %671 = vset.pattern.permute.xlu0 2
    %672 = vperm.xlu0 %671, %v32
    %v673 = vpop.permute.xlu0 %672
    %vm674 = vcmp.eq.s32.totalorder %v652, %v66
    %vm675 = vcmp.eq.s32.totalorder %v652, %v67
    %vm676 = vcmp.eq.s32.totalorder %v655, %v66
    %vm677 = vcmp.eq.s32.totalorder %v655, %v67
    %vm678 = vcmp.eq.s32.totalorder %v658, %v66
    %vm679 = vcmp.eq.s32.totalorder %v658, %v67
    %vm680 = vcmp.eq.s32.totalorder %v661, %v66
    %vm681 = vcmp.eq.s32.totalorder %v661, %v67
    %vm682 = vcmp.eq.s32.totalorder %v664, %v66
    %vm683 = vcmp.eq.s32.totalorder %v664, %v67
    %vm684 = vcmp.eq.s32.totalorder %v667, %v66
    %vm685 = vcmp.eq.s32.totalorder %v667, %v67
    %vm686 = vcmp.eq.s32.totalorder %v670, %v66
    %vm687 = vcmp.eq.s32.totalorder %v670, %v67
    %vm688 = vcmp.eq.s32.totalorder %v673, %v66
    %vm689 = vcmp.eq.s32.totalorder %v673, %v67
    %v690 = vsel %vm674, 1, 0
    %v691 = vsel %vm675, 1, 0
    %v692 = vsel %vm676, 1, 0
    %v693 = vsel %vm677, 1, 0
    %v694 = vsel %vm678, 1, 0
    %v695 = vsel %vm679, 1, 0
    %v696 = vsel %vm680, 1, 0
    %v697 = vsel %vm681, 1, 0
    %v698 = vsel %vm682, 1, 0
    %v699 = vsel %vm683, 1, 0
    %v700 = vsel %vm684, 1, 0
    %v701 = vsel %vm685, 1, 0
    %v702 = vsel %vm686, 1, 0
    %v703 = vsel %vm687, 1, 0
    %v704 = vsel %vm688, 1, 0
    %v705 = vsel %vm689, 1, 0
    %v706 = vcvt.s32.f32 %v690
    %v707 = vcvt.s32.f32 %v691
    %v708 = vcvt.s32.f32 %v692
    %v709 = vcvt.s32.f32 %v693
    %v710 = vcvt.s32.f32 %v694
    %v711 = vcvt.s32.f32 %v695
    %v712 = vcvt.s32.f32 %v696
    %v713 = vcvt.s32.f32 %v697
    %v714 = vcvt.s32.f32 %v698
    %v715 = vcvt.s32.f32 %v699
    %v716 = vcvt.s32.f32 %v700
    %v717 = vcvt.s32.f32 %v701
    %v718 = vcvt.s32.f32 %v702
    %v719 = vcvt.s32.f32 %v703
    %v720 = vcvt.s32.f32 %v704
    %v721 = vcvt.s32.f32 %v705
    %v722 = vpack.c.bf16 %v708, %v706
    %v723 = vpack.c.bf16 %v709, %v707
    %v724 = vpack.c.bf16 %v712, %v710
    %v725 = vpack.c.bf16 %v713, %v711
    %v726 = vpack.c.bf16 %v716, %v714
    %v727 = vpack.c.bf16 %v717, %v715
    %v728 = vpack.c.bf16 %v720, %v718
    %v729 = vpack.c.bf16 %v721, %v719
    %730 = vmatprep.subr.bf16.mxu0 0
    %731 = vmatpush1.bf16.msra.mxu0 %v212
    %732 = vmatprep.subr.bf16.mxu0 0
    %733 = vmatpush1.bf16.msra.mxu0 %v213
    %734 = vmatprep.subr.bf16.mxu0 0
    %735 = vmatpush1.bf16.msra.mxu0 %v214
    %736 = vmatprep.subr.bf16.mxu0 0
    %737 = vmatpush1.bf16.msra.mxu0 %v215
    %738 = vmatprep.subr.bf16.mxu0 0
    %739 = vmatpush1.bf16.msra.mxu0 %v216
    %740 = vmatprep.subr.bf16.mxu0 0
    %741 = vmatpush1.bf16.msra.mxu0 %v217
    %742 = vmatprep.subr.bf16.mxu0 0
    %743 = vmatpush1.bf16.msra.mxu0 %v218
    %744 = vmatprep.subr.bf16.mxu0 0
    %745 = vmatpush1.bf16.msra.mxu0 %v219
    %746 = vmatprep.subr.bf16.mxu0 0
    %747 = vmatpush1.bf16.msra.mxu0 %v220
    %748 = vmatprep.subr.bf16.mxu0 0
    %749 = vmatpush1.bf16.msra.mxu0 %v221
    %750 = vmatprep.subr.bf16.mxu0 0
    %751 = vmatpush1.bf16.msra.mxu0 %v222
    %752 = vmatprep.subr.bf16.mxu0 0
    %753 = vmatpush1.bf16.msra.mxu0 %v223
    %754 = vmatprep.subr.bf16.mxu0 0
    %755 = vmatpush1.bf16.msra.mxu0 %v224
    %756 = vmatprep.subr.bf16.mxu0 0
    %757 = vmatpush1.bf16.msra.mxu0 %v225
    %758 = vmatprep.subr.bf16.mxu0 0
    %759 = vmatpush1.bf16.msra.mxu0 %v226
    %760 = vmatprep.subr.bf16.mxu0 0
    %761 = vmatpush1.bf16.msra.mxu0 %v227
    %762 = vmatprep.mubr.bf16.mxu0 %v723
    %763 = vmatmul.mubr.bf16.gmra.mrb[0].mxu0 %v722
    %v764 = vpop.f32.mrb[0].mxu0
    %v765 = vadd.f32 0.0, %v764
    %v766 = vpop.f32.mrb[0].mxu0
    %v767 = vpop.f32.mrb[0].mxu0
    %v768 = vadd.f32 0.0, %v767
    %v769 = vpop.f32.mrb[0].mxu0
    %770 = vmatprep.mubr.bf16.mxu0 %v725
    %771 = vmatmul.mubr.bf16.gmra.mrb[0].mxu0 %v724
    %v772 = vpop.f32.mrb[0].mxu0
    %v773 = vadd.f32 0.0, %v772
    %v774 = vpop.f32.mrb[0].mxu0
    %v775 = vpop.f32.mrb[0].mxu0
    %v776 = vadd.f32 0.0, %v775
    %v777 = vpop.f32.mrb[0].mxu0
    %778 = vmatprep.mubr.bf16.mxu0 %v727
    %779 = vmatmul.mubr.bf16.gmra.mrb[0].mxu0 %v726
    %v780 = vpop.f32.mrb[0].mxu0
    %v781 = vadd.f32 0.0, %v780
    %v782 = vpop.f32.mrb[0].mxu0
    %v783 = vpop.f32.mrb[0].mxu0
    %v784 = vadd.f32 0.0, %v783
    %v785 = vpop.f32.mrb[0].mxu0
    %786 = vmatprep.mubr.bf16.mxu0 %v729
    %787 = vmatmul.mubr.bf16.gmra.mrb[0].mxu0 %v728
    %v788 = vpop.f32.mrb[0].mxu0
    %v789 = vadd.f32 0.0, %v788
    %v790 = vpop.f32.mrb[0].mxu0
    %v791 = vpop.f32.mrb[0].mxu0
    %v792 = vadd.f32 0.0, %v791
    %v793 = vpop.f32.mrb[0].mxu0
    %794 = vdwg.mxu0
    %v795 = vpack.c.bf16 %v768, %v765
    %v796 = vpack.c.bf16 %v776, %v773
    %v797 = vpack.c.bf16 %v784, %v781
    %v798 = vpack.c.bf16 %v792, %v789
    %s799 = scalar_lea.vmem %s2, 32
    %v800 = vld [vmem:[%s799] sm:$0xf]
    %v801 = vld [vmem:[%s799 + $0x4] sm:$0xf]
    %v802 = vld [vmem:[%s799 + $0x8] sm:$0xf]
    %v803 = vld [vmem:[%s799 + $0xc] sm:$0xf]
    %v808 = vunpack.c.l.b16 %v800
    %v809 = vunpack.c.l.b16 %v801
    %v810 = vunpack.c.l.b16 %v802
    %v811 = vunpack.c.l.b16 %v803
    %v812 = vpack.c.b16 %v809, %v808
    %v813 = vpack.c.b16 %v811, %v810
    %v817 = vsel %vm483, %v795, 0
    %v820 = vsel %vm483, %v796, 0
    %v823 = vsel %vm483, %v797, 0
    %v826 = vsel %vm483, %v798, 0
    %828 = vmatprep.subr.bf16.mxu0 0
    %829 = vmatpush1.bf16.msra.mxu0 %v812
    %830 = vmatprep.subr.bf16.mxu0 0
    %831 = vmatpush1.bf16.msra.mxu0 %v813
    %832 = vmatprep.subr.bf16.mxu0 0
    %833 = vmatpush1.bf16.msra.mxu0 0
    %834 = vmatprep.subr.bf16.mxu0 0
    %835 = vmatpush1.bf16.msra.mxu0 0
    %836 = vmatprep.subr.bf16.mxu0 0
    %837 = vmatpush1.bf16.msra.mxu0 0
    %838 = vmatprep.subr.bf16.mxu0 0
    %839 = vmatpush1.bf16.msra.mxu0 0
    %840 = vmatprep.subr.bf16.mxu0 0
    %841 = vmatpush1.bf16.msra.mxu0 0
    %842 = vmatprep.subr.bf16.mxu0 0
    %843 = vmatpush1.bf16.msra.mxu0 0
    %844 = vmatprep.subr.bf16.mxu0 0
    %845 = vmatpush1.bf16.msra.mxu0 0
    %846 = vmatprep.subr.bf16.mxu0 0
    %847 = vmatpush1.bf16.msra.mxu0 0
    %848 = vmatprep.subr.bf16.mxu0 0
    %849 = vmatpush1.bf16.msra.mxu0 0
    %850 = vmatprep.subr.bf16.mxu0 0
    %851 = vmatpush1.bf16.msra.mxu0 0
    %852 = vmatprep.subr.bf16.mxu0 0
    %853 = vmatpush1.bf16.msra.mxu0 0
    %854 = vmatprep.subr.bf16.mxu0 0
    %855 = vmatpush1.bf16.msra.mxu0 0
    %856 = vmatprep.subr.bf16.mxu0 0
    %857 = vmatpush1.bf16.msra.mxu0 0
    %858 = vmatprep.subr.bf16.mxu0 0
    %859 = vmatpush1.bf16.msra.mxu0 0
    %860 = vmatprep.mubr.bf16.mxu0 0
    %861 = vmatmul.mubr.bf16.gmra.mrb[0].mxu0 %v817
    %v862 = vpop.f32.mrb[0].mxu0
    %v863 = vadd.f32 0.0, %v862
    %v864 = vpop.f32.mrb[0].mxu0
    %v865 = vpop.f32.mrb[0].mxu0
    %v866 = vadd.f32 0.0, %v865
    %v867 = vpop.f32.mrb[0].mxu0
    %868 = vmatprep.mubr.bf16.mxu0 0
    %869 = vmatmul.mubr.bf16.gmra.mrb[0].mxu0 %v820
    %v870 = vpop.f32.mrb[0].mxu0
    %v871 = vadd.f32 0.0, %v870
    %v872 = vpop.f32.mrb[0].mxu0
    %v873 = vpop.f32.mrb[0].mxu0
    %v874 = vadd.f32 0.0, %v873
    %v875 = vpop.f32.mrb[0].mxu0
    %876 = vmatprep.mubr.bf16.mxu0 0
    %877 = vmatmul.mubr.bf16.gmra.mrb[0].mxu0 %v823
    %v878 = vpop.f32.mrb[0].mxu0
    %v879 = vadd.f32 0.0, %v878
    %v880 = vpop.f32.mrb[0].mxu0
    %v881 = vpop.f32.mrb[0].mxu0
    %v882 = vadd.f32 0.0, %v881
    %v883 = vpop.f32.mrb[0].mxu0
    %884 = vmatprep.mubr.bf16.mxu0 0
    %885 = vmatmul.mubr.bf16.gmra.mrb[0].mxu0 %v826
    %v886 = vpop.f32.mrb[0].mxu0
    %v887 = vadd.f32 0.0, %v886
    %v888 = vpop.f32.mrb[0].mxu0
    %v889 = vpop.f32.mrb[0].mxu0
    %v890 = vadd.f32 0.0, %v889
    %v891 = vpop.f32.mrb[0].mxu0
    %892 = vdwg.mxu0
    %v893 = vadd.f32 %v620, %v863
    %v894 = vadd.f32 %v623, %v866
    %v895 = vadd.f32 %v628, %v871
    %v896 = vadd.f32 %v631, %v874
    %v897 = vadd.f32 %v636, %v879
    %v898 = vadd.f32 %v639, %v882
    %v899 = vadd.f32 %v644, %v887
    %v900 = vadd.f32 %v647, %v890
    %901 = vset.pattern.permute.xlu0 3
    %902 = vperm.xlu0 %901, %v25
    %v903 = vpop.permute.xlu0 %902
    %904 = vset.pattern.permute.xlu0 3
    %905 = vperm.xlu0 %904, %v26
    %v906 = vpop.permute.xlu0 %905
    %907 = vset.pattern.permute.xlu0 3
    %908 = vperm.xlu0 %907, %v27
    %v909 = vpop.permute.xlu0 %908
    %910 = vset.pattern.permute.xlu0 3
    %911 = vperm.xlu0 %910, %v28
    %v912 = vpop.permute.xlu0 %911
    %913 = vset.pattern.permute.xlu0 3
    %914 = vperm.xlu0 %913, %v29
    %v915 = vpop.permute.xlu0 %914
    %916 = vset.pattern.permute.xlu0 3
    %917 = vperm.xlu0 %916, %v30
    %v918 = vpop.permute.xlu0 %917
    %919 = vset.pattern.permute.xlu0 3
    %920 = vperm.xlu0 %919, %v31
    %v921 = vpop.permute.xlu0 %920
    %922 = vset.pattern.permute.xlu0 3
    %923 = vperm.xlu0 %922, %v32
    %v924 = vpop.permute.xlu0 %923
    %vm925 = vcmp.eq.s32.totalorder %v903, %v66
    %vm926 = vcmp.eq.s32.totalorder %v903, %v67
    %vm927 = vcmp.eq.s32.totalorder %v906, %v66
    %vm928 = vcmp.eq.s32.totalorder %v906, %v67
    %vm929 = vcmp.eq.s32.totalorder %v909, %v66
    %vm930 = vcmp.eq.s32.totalorder %v909, %v67
    %vm931 = vcmp.eq.s32.totalorder %v912, %v66
    %vm932 = vcmp.eq.s32.totalorder %v912, %v67
    %vm933 = vcmp.eq.s32.totalorder %v915, %v66
    %vm934 = vcmp.eq.s32.totalorder %v915, %v67
    %vm935 = vcmp.eq.s32.totalorder %v918, %v66
    %vm936 = vcmp.eq.s32.totalorder %v918, %v67
    %vm937 = vcmp.eq.s32.totalorder %v921, %v66
    %vm938 = vcmp.eq.s32.totalorder %v921, %v67
    %vm939 = vcmp.eq.s32.totalorder %v924, %v66
    %vm940 = vcmp.eq.s32.totalorder %v924, %v67
    %v941 = vsel %vm925, 1, 0
    %v942 = vsel %vm926, 1, 0
    %v943 = vsel %vm927, 1, 0
    %v944 = vsel %vm928, 1, 0
    %v945 = vsel %vm929, 1, 0
    %v946 = vsel %vm930, 1, 0
    %v947 = vsel %vm931, 1, 0
    %v948 = vsel %vm932, 1, 0
    %v949 = vsel %vm933, 1, 0
    %v950 = vsel %vm934, 1, 0
    %v951 = vsel %vm935, 1, 0
    %v952 = vsel %vm936, 1, 0
    %v953 = vsel %vm937, 1, 0
    %v954 = vsel %vm938, 1, 0
    %v955 = vsel %vm939, 1, 0
    %v956 = vsel %vm940, 1, 0
    %v957 = vcvt.s32.f32 %v941
    %v958 = vcvt.s32.f32 %v942
    %v959 = vcvt.s32.f32 %v943
    %v960 = vcvt.s32.f32 %v944
    %v961 = vcvt.s32.f32 %v945
    %v962 = vcvt.s32.f32 %v946
    %v963 = vcvt.s32.f32 %v947
    %v964 = vcvt.s32.f32 %v948
    %v965 = vcvt.s32.f32 %v949
    %v966 = vcvt.s32.f32 %v950
    %v967 = vcvt.s32.f32 %v951
    %v968 = vcvt.s32.f32 %v952
    %v969 = vcvt.s32.f32 %v953
    %v970 = vcvt.s32.f32 %v954
    %v971 = vcvt.s32.f32 %v955
    %v972 = vcvt.s32.f32 %v956
    %v973 = vpack.c.bf16 %v959, %v957
    %v974 = vpack.c.bf16 %v960, %v958
    %v975 = vpack.c.bf16 %v963, %v961
    %v976 = vpack.c.bf16 %v964, %v962
    %v977 = vpack.c.bf16 %v967, %v965
    %v978 = vpack.c.bf16 %v968, %v966
    %v979 = vpack.c.bf16 %v971, %v969
    %v980 = vpack.c.bf16 %v972, %v970
    %981 = vmatprep.subr.bf16.mxu0 0
    %982 = vmatpush1.bf16.msra.mxu0 %v212
    %983 = vmatprep.subr.bf16.mxu0 0
    %984 = vmatpush1.bf16.msra.mxu0 %v213
    %985 = vmatprep.subr.bf16.mxu0 0
    %986 = vmatpush1.bf16.msra.mxu0 %v214
    %987 = vmatprep.subr.bf16.mxu0 0
    %988 = vmatpush1.bf16.msra.mxu0 %v215
    %989 = vmatprep.subr.bf16.mxu0 0
    %990 = vmatpush1.bf16.msra.mxu0 %v216
    %991 = vmatprep.subr.bf16.mxu0 0
    %992 = vmatpush1.bf16.msra.mxu0 %v217
    %993 = vmatprep.subr.bf16.mxu0 0
    %994 = vmatpush1.bf16.msra.mxu0 %v218
    %995 = vmatprep.subr.bf16.mxu0 0
    %996 = vmatpush1.bf16.msra.mxu0 %v219
    %997 = vmatprep.subr.bf16.mxu0 0
    %998 = vmatpush1.bf16.msra.mxu0 %v220
    %999 = vmatprep.subr.bf16.mxu0 0
    %1000 = vmatpush1.bf16.msra.mxu0 %v221
    %1001 = vmatprep.subr.bf16.mxu0 0
    %1002 = vmatpush1.bf16.msra.mxu0 %v222
    %1003 = vmatprep.subr.bf16.mxu0 0
    %1004 = vmatpush1.bf16.msra.mxu0 %v223
    %1005 = vmatprep.subr.bf16.mxu0 0
    %1006 = vmatpush1.bf16.msra.mxu0 %v224
    %1007 = vmatprep.subr.bf16.mxu0 0
    %1008 = vmatpush1.bf16.msra.mxu0 %v225
    %1009 = vmatprep.subr.bf16.mxu0 0
    %1010 = vmatpush1.bf16.msra.mxu0 %v226
    %1011 = vmatprep.subr.bf16.mxu0 0
    %1012 = vmatpush1.bf16.msra.mxu0 %v227
    %1013 = vmatprep.mubr.bf16.mxu0 %v974
    %1014 = vmatmul.mubr.bf16.gmra.mrb[0].mxu0 %v973
    %v1015 = vpop.f32.mrb[0].mxu0
    %v1016 = vadd.f32 0.0, %v1015
    %v1017 = vpop.f32.mrb[0].mxu0
    %v1018 = vpop.f32.mrb[0].mxu0
    %v1019 = vadd.f32 0.0, %v1018
    %v1020 = vpop.f32.mrb[0].mxu0
    %1021 = vmatprep.mubr.bf16.mxu0 %v976
    %1022 = vmatmul.mubr.bf16.gmra.mrb[0].mxu0 %v975
    %v1023 = vpop.f32.mrb[0].mxu0
    %v1024 = vadd.f32 0.0, %v1023
    %v1025 = vpop.f32.mrb[0].mxu0
    %v1026 = vpop.f32.mrb[0].mxu0
    %v1027 = vadd.f32 0.0, %v1026
    %v1028 = vpop.f32.mrb[0].mxu0
    %1029 = vmatprep.mubr.bf16.mxu0 %v978
    %1030 = vmatmul.mubr.bf16.gmra.mrb[0].mxu0 %v977
    %v1031 = vpop.f32.mrb[0].mxu0
    %v1032 = vadd.f32 0.0, %v1031
    %v1033 = vpop.f32.mrb[0].mxu0
    %v1034 = vpop.f32.mrb[0].mxu0
    %v1035 = vadd.f32 0.0, %v1034
    %v1036 = vpop.f32.mrb[0].mxu0
    %1037 = vmatprep.mubr.bf16.mxu0 %v980
    %1038 = vmatmul.mubr.bf16.gmra.mrb[0].mxu0 %v979
    %v1039 = vpop.f32.mrb[0].mxu0
    %v1040 = vadd.f32 0.0, %v1039
    %v1041 = vpop.f32.mrb[0].mxu0
    %v1042 = vpop.f32.mrb[0].mxu0
    %v1043 = vadd.f32 0.0, %v1042
    %v1044 = vpop.f32.mrb[0].mxu0
    %1045 = vdwg.mxu0
    %v1046 = vpack.c.bf16 %v1019, %v1016
    %v1047 = vpack.c.bf16 %v1027, %v1024
    %v1048 = vpack.c.bf16 %v1035, %v1032
    %v1049 = vpack.c.bf16 %v1043, %v1040
    %s1050 = scalar_lea.vmem %s2, 48
    %v1051 = vld [vmem:[%s1050] sm:$0xf]
    %v1052 = vld [vmem:[%s1050 + $0x4] sm:$0xf]
    %v1053 = vld [vmem:[%s1050 + $0x8] sm:$0xf]
    %v1054 = vld [vmem:[%s1050 + $0xc] sm:$0xf]
    %v1059 = vunpack.c.l.b16 %v1051
    %v1060 = vunpack.c.l.b16 %v1052
    %v1061 = vunpack.c.l.b16 %v1053
    %v1062 = vunpack.c.l.b16 %v1054
    %v1063 = vpack.c.b16 %v1060, %v1059
    %v1064 = vpack.c.b16 %v1062, %v1061
    %v1068 = vsel %vm483, %v1046, 0
    %v1071 = vsel %vm483, %v1047, 0
    %v1074 = vsel %vm483, %v1048, 0
    %v1077 = vsel %vm483, %v1049, 0
    %1079 = vmatprep.subr.bf16.mxu0 0
    %1080 = vmatpush1.bf16.msra.mxu0 %v1063
    %1081 = vmatprep.subr.bf16.mxu0 0
    %1082 = vmatpush1.bf16.msra.mxu0 %v1064
    %1083 = vmatprep.subr.bf16.mxu0 0
    %1084 = vmatpush1.bf16.msra.mxu0 0
    %1085 = vmatprep.subr.bf16.mxu0 0
    %1086 = vmatpush1.bf16.msra.mxu0 0
    %1087 = vmatprep.subr.bf16.mxu0 0
    %1088 = vmatpush1.bf16.msra.mxu0 0
    %1089 = vmatprep.subr.bf16.mxu0 0
    %1090 = vmatpush1.bf16.msra.mxu0 0
    %1091 = vmatprep.subr.bf16.mxu0 0
    %1092 = vmatpush1.bf16.msra.mxu0 0
    %1093 = vmatprep.subr.bf16.mxu0 0
    %1094 = vmatpush1.bf16.msra.mxu0 0
    %1095 = vmatprep.subr.bf16.mxu0 0
    %1096 = vmatpush1.bf16.msra.mxu0 0
    %1097 = vmatprep.subr.bf16.mxu0 0
    %1098 = vmatpush1.bf16.msra.mxu0 0
    %1099 = vmatprep.subr.bf16.mxu0 0
    %1100 = vmatpush1.bf16.msra.mxu0 0
    %1101 = vmatprep.subr.bf16.mxu0 0
    %1102 = vmatpush1.bf16.msra.mxu0 0
    %1103 = vmatprep.subr.bf16.mxu0 0
    %1104 = vmatpush1.bf16.msra.mxu0 0
    %1105 = vmatprep.subr.bf16.mxu0 0
    %1106 = vmatpush1.bf16.msra.mxu0 0
    %1107 = vmatprep.subr.bf16.mxu0 0
    %1108 = vmatpush1.bf16.msra.mxu0 0
    %1109 = vmatprep.subr.bf16.mxu0 0
    %1110 = vmatpush1.bf16.msra.mxu0 0
    %1111 = vmatprep.mubr.bf16.mxu0 0
    %1112 = vmatmul.mubr.bf16.gmra.mrb[0].mxu0 %v1068
    %v1113 = vpop.f32.mrb[0].mxu0
    %v1114 = vadd.f32 0.0, %v1113
    %v1115 = vpop.f32.mrb[0].mxu0
    %v1116 = vpop.f32.mrb[0].mxu0
    %v1117 = vadd.f32 0.0, %v1116
    %v1118 = vpop.f32.mrb[0].mxu0
    %1119 = vmatprep.mubr.bf16.mxu0 0
    %1120 = vmatmul.mubr.bf16.gmra.mrb[0].mxu0 %v1071
    %v1121 = vpop.f32.mrb[0].mxu0
    %v1122 = vadd.f32 0.0, %v1121
    %v1123 = vpop.f32.mrb[0].mxu0
    %v1124 = vpop.f32.mrb[0].mxu0
    %v1125 = vadd.f32 0.0, %v1124
    %v1126 = vpop.f32.mrb[0].mxu0
    %1127 = vmatprep.mubr.bf16.mxu0 0
    %1128 = vmatmul.mubr.bf16.gmra.mrb[0].mxu0 %v1074
    %v1129 = vpop.f32.mrb[0].mxu0
    %v1130 = vadd.f32 0.0, %v1129
    %v1131 = vpop.f32.mrb[0].mxu0
    %v1132 = vpop.f32.mrb[0].mxu0
    %v1133 = vadd.f32 0.0, %v1132
    %v1134 = vpop.f32.mrb[0].mxu0
    %1135 = vmatprep.mubr.bf16.mxu0 0
    %1136 = vmatmul.mubr.bf16.gmra.mrb[0].mxu0 %v1077
    %v1137 = vpop.f32.mrb[0].mxu0
    %v1138 = vadd.f32 0.0, %v1137
    %v1139 = vpop.f32.mrb[0].mxu0
    %v1140 = vpop.f32.mrb[0].mxu0
    %v1141 = vadd.f32 0.0, %v1140
    %v1142 = vpop.f32.mrb[0].mxu0
    %1143 = vdwg.mxu0
    %v1144 = vadd.f32 %v893, %v1114
    %v1145 = vadd.f32 %v894, %v1117
    %v1146 = vadd.f32 %v895, %v1122
    %v1147 = vadd.f32 %v896, %v1125
    %v1148 = vadd.f32 %v897, %v1130
    %v1149 = vadd.f32 %v898, %v1133
    %v1150 = vadd.f32 %v899, %v1138
    %v1151 = vadd.f32 %v900, %v1141
    %1152 = vset.pattern.permute.xlu0 4
    %1153 = vperm.xlu0 %1152, %v25
    %v1154 = vpop.permute.xlu0 %1153
    %1155 = vset.pattern.permute.xlu0 4
    %1156 = vperm.xlu0 %1155, %v26
    %v1157 = vpop.permute.xlu0 %1156
    %1158 = vset.pattern.permute.xlu0 4
    %1159 = vperm.xlu0 %1158, %v27
    %v1160 = vpop.permute.xlu0 %1159
    %1161 = vset.pattern.permute.xlu0 4
    %1162 = vperm.xlu0 %1161, %v28
    %v1163 = vpop.permute.xlu0 %1162
    %1164 = vset.pattern.permute.xlu0 4
    %1165 = vperm.xlu0 %1164, %v29
    %v1166 = vpop.permute.xlu0 %1165
    %1167 = vset.pattern.permute.xlu0 4
    %1168 = vperm.xlu0 %1167, %v30
    %v1169 = vpop.permute.xlu0 %1168
    %1170 = vset.pattern.permute.xlu0 4
    %1171 = vperm.xlu0 %1170, %v31
    %v1172 = vpop.permute.xlu0 %1171
    %1173 = vset.pattern.permute.xlu0 4
    %1174 = vperm.xlu0 %1173, %v32
    %v1175 = vpop.permute.xlu0 %1174
    %vm1176 = vcmp.eq.s32.totalorder %v1154, %v66
    %vm1177 = vcmp.eq.s32.totalorder %v1154, %v67
    %vm1178 = vcmp.eq.s32.totalorder %v1157, %v66
    %vm1179 = vcmp.eq.s32.totalorder %v1157, %v67
    %vm1180 = vcmp.eq.s32.totalorder %v1160, %v66
    %vm1181 = vcmp.eq.s32.totalorder %v1160, %v67
    %vm1182 = vcmp.eq.s32.totalorder %v1163, %v66
    %vm1183 = vcmp.eq.s32.totalorder %v1163, %v67
    %vm1184 = vcmp.eq.s32.totalorder %v1166, %v66
    %vm1185 = vcmp.eq.s32.totalorder %v1166, %v67
    %vm1186 = vcmp.eq.s32.totalorder %v1169, %v66
    %vm1187 = vcmp.eq.s32.totalorder %v1169, %v67
    %vm1188 = vcmp.eq.s32.totalorder %v1172, %v66
    %vm1189 = vcmp.eq.s32.totalorder %v1172, %v67
    %vm1190 = vcmp.eq.s32.totalorder %v1175, %v66
    %vm1191 = vcmp.eq.s32.totalorder %v1175, %v67
    %v1192 = vsel %vm1176, 1, 0
    %v1193 = vsel %vm1177, 1, 0
    %v1194 = vsel %vm1178, 1, 0
    %v1195 = vsel %vm1179, 1, 0
    %v1196 = vsel %vm1180, 1, 0
    %v1197 = vsel %vm1181, 1, 0
    %v1198 = vsel %vm1182, 1, 0
    %v1199 = vsel %vm1183, 1, 0
    %v1200 = vsel %vm1184, 1, 0
    %v1201 = vsel %vm1185, 1, 0
    %v1202 = vsel %vm1186, 1, 0
    %v1203 = vsel %vm1187, 1, 0
    %v1204 = vsel %vm1188, 1, 0
    %v1205 = vsel %vm1189, 1, 0
    %v1206 = vsel %vm1190, 1, 0
    %v1207 = vsel %vm1191, 1, 0
    %v1208 = vcvt.s32.f32 %v1192
    %v1209 = vcvt.s32.f32 %v1193
    %v1210 = vcvt.s32.f32 %v1194
    %v1211 = vcvt.s32.f32 %v1195
    %v1212 = vcvt.s32.f32 %v1196
    %v1213 = vcvt.s32.f32 %v1197
    %v1214 = vcvt.s32.f32 %v1198
    %v1215 = vcvt.s32.f32 %v1199
    %v1216 = vcvt.s32.f32 %v1200
    %v1217 = vcvt.s32.f32 %v1201
    %v1218 = vcvt.s32.f32 %v1202
    %v1219 = vcvt.s32.f32 %v1203
    %v1220 = vcvt.s32.f32 %v1204
    %v1221 = vcvt.s32.f32 %v1205
    %v1222 = vcvt.s32.f32 %v1206
    %v1223 = vcvt.s32.f32 %v1207
    %v1224 = vpack.c.bf16 %v1210, %v1208
    %v1225 = vpack.c.bf16 %v1211, %v1209
    %v1226 = vpack.c.bf16 %v1214, %v1212
    %v1227 = vpack.c.bf16 %v1215, %v1213
    %v1228 = vpack.c.bf16 %v1218, %v1216
    %v1229 = vpack.c.bf16 %v1219, %v1217
    %v1230 = vpack.c.bf16 %v1222, %v1220
    %v1231 = vpack.c.bf16 %v1223, %v1221
    %1232 = vmatprep.subr.bf16.mxu0 0
    %1233 = vmatpush1.bf16.msra.mxu0 %v212
    %1234 = vmatprep.subr.bf16.mxu0 0
    %1235 = vmatpush1.bf16.msra.mxu0 %v213
    %1236 = vmatprep.subr.bf16.mxu0 0
    %1237 = vmatpush1.bf16.msra.mxu0 %v214
    %1238 = vmatprep.subr.bf16.mxu0 0
    %1239 = vmatpush1.bf16.msra.mxu0 %v215
    %1240 = vmatprep.subr.bf16.mxu0 0
    %1241 = vmatpush1.bf16.msra.mxu0 %v216
    %1242 = vmatprep.subr.bf16.mxu0 0
    %1243 = vmatpush1.bf16.msra.mxu0 %v217
    %1244 = vmatprep.subr.bf16.mxu0 0
    %1245 = vmatpush1.bf16.msra.mxu0 %v218
    %1246 = vmatprep.subr.bf16.mxu0 0
    %1247 = vmatpush1.bf16.msra.mxu0 %v219
    %1248 = vmatprep.subr.bf16.mxu0 0
    %1249 = vmatpush1.bf16.msra.mxu0 %v220
    %1250 = vmatprep.subr.bf16.mxu0 0
    %1251 = vmatpush1.bf16.msra.mxu0 %v221
    %1252 = vmatprep.subr.bf16.mxu0 0
    %1253 = vmatpush1.bf16.msra.mxu0 %v222
    %1254 = vmatprep.subr.bf16.mxu0 0
    %1255 = vmatpush1.bf16.msra.mxu0 %v223
    %1256 = vmatprep.subr.bf16.mxu0 0
    %1257 = vmatpush1.bf16.msra.mxu0 %v224
    %1258 = vmatprep.subr.bf16.mxu0 0
    %1259 = vmatpush1.bf16.msra.mxu0 %v225
    %1260 = vmatprep.subr.bf16.mxu0 0
    %1261 = vmatpush1.bf16.msra.mxu0 %v226
    %1262 = vmatprep.subr.bf16.mxu0 0
    %1263 = vmatpush1.bf16.msra.mxu0 %v227
    %1264 = vmatprep.mubr.bf16.mxu0 %v1225
    %1265 = vmatmul.mubr.bf16.gmra.mrb[0].mxu0 %v1224
    %v1266 = vpop.f32.mrb[0].mxu0
    %v1267 = vadd.f32 0.0, %v1266
    %v1268 = vpop.f32.mrb[0].mxu0
    %v1269 = vpop.f32.mrb[0].mxu0
    %v1270 = vadd.f32 0.0, %v1269
    %v1271 = vpop.f32.mrb[0].mxu0
    %1272 = vmatprep.mubr.bf16.mxu0 %v1227
    %1273 = vmatmul.mubr.bf16.gmra.mrb[0].mxu0 %v1226
    %v1274 = vpop.f32.mrb[0].mxu0
    %v1275 = vadd.f32 0.0, %v1274
    %v1276 = vpop.f32.mrb[0].mxu0
    %v1277 = vpop.f32.mrb[0].mxu0
    %v1278 = vadd.f32 0.0, %v1277
    %v1279 = vpop.f32.mrb[0].mxu0
    %1280 = vmatprep.mubr.bf16.mxu0 %v1229
    %1281 = vmatmul.mubr.bf16.gmra.mrb[0].mxu0 %v1228
    %v1282 = vpop.f32.mrb[0].mxu0
    %v1283 = vadd.f32 0.0, %v1282
    %v1284 = vpop.f32.mrb[0].mxu0
    %v1285 = vpop.f32.mrb[0].mxu0
    %v1286 = vadd.f32 0.0, %v1285
    %v1287 = vpop.f32.mrb[0].mxu0
    %1288 = vmatprep.mubr.bf16.mxu0 %v1231
    %1289 = vmatmul.mubr.bf16.gmra.mrb[0].mxu0 %v1230
    %v1290 = vpop.f32.mrb[0].mxu0
    %v1291 = vadd.f32 0.0, %v1290
    %v1292 = vpop.f32.mrb[0].mxu0
    %v1293 = vpop.f32.mrb[0].mxu0
    %v1294 = vadd.f32 0.0, %v1293
    %v1295 = vpop.f32.mrb[0].mxu0
    %1296 = vdwg.mxu0
    %v1297 = vpack.c.bf16 %v1270, %v1267
    %v1298 = vpack.c.bf16 %v1278, %v1275
    %v1299 = vpack.c.bf16 %v1286, %v1283
    %v1300 = vpack.c.bf16 %v1294, %v1291
    %s1301 = scalar_lea.vmem %s2, 64
    %v1302 = vld [vmem:[%s1301] sm:$0xf]
    %v1303 = vld [vmem:[%s1301 + $0x4] sm:$0xf]
    %v1304 = vld [vmem:[%s1301 + $0x8] sm:$0xf]
    %v1305 = vld [vmem:[%s1301 + $0xc] sm:$0xf]
    %v1310 = vunpack.c.l.b16 %v1302
    %v1311 = vunpack.c.l.b16 %v1303
    %v1312 = vunpack.c.l.b16 %v1304
    %v1313 = vunpack.c.l.b16 %v1305
    %v1314 = vpack.c.b16 %v1311, %v1310
    %v1315 = vpack.c.b16 %v1313, %v1312
    %v1319 = vsel %vm483, %v1297, 0
    %v1322 = vsel %vm483, %v1298, 0
    %v1325 = vsel %vm483, %v1299, 0
    %v1328 = vsel %vm483, %v1300, 0
    %1330 = vmatprep.subr.bf16.mxu0 0
    %1331 = vmatpush1.bf16.msra.mxu0 %v1314
    %1332 = vmatprep.subr.bf16.mxu0 0
    %1333 = vmatpush1.bf16.msra.mxu0 %v1315
    %1334 = vmatprep.subr.bf16.mxu0 0
    %1335 = vmatpush1.bf16.msra.mxu0 0
    %1336 = vmatprep.subr.bf16.mxu0 0
    %1337 = vmatpush1.bf16.msra.mxu0 0
    %1338 = vmatprep.subr.bf16.mxu0 0
    %1339 = vmatpush1.bf16.msra.mxu0 0
    %1340 = vmatprep.subr.bf16.mxu0 0
    %1341 = vmatpush1.bf16.msra.mxu0 0
    %1342 = vmatprep.subr.bf16.mxu0 0
    %1343 = vmatpush1.bf16.msra.mxu0 0
    %1344 = vmatprep.subr.bf16.mxu0 0
    %1345 = vmatpush1.bf16.msra.mxu0 0
    %1346 = vmatprep.subr.bf16.mxu0 0
    %1347 = vmatpush1.bf16.msra.mxu0 0
    %1348 = vmatprep.subr.bf16.mxu0 0
    %1349 = vmatpush1.bf16.msra.mxu0 0
    %1350 = vmatprep.subr.bf16.mxu0 0
    %1351 = vmatpush1.bf16.msra.mxu0 0
    %1352 = vmatprep.subr.bf16.mxu0 0
    %1353 = vmatpush1.bf16.msra.mxu0 0
    %1354 = vmatprep.subr.bf16.mxu0 0
    %1355 = vmatpush1.bf16.msra.mxu0 0
    %1356 = vmatprep.subr.bf16.mxu0 0
    %1357 = vmatpush1.bf16.msra.mxu0 0
    %1358 = vmatprep.subr.bf16.mxu0 0
    %1359 = vmatpush1.bf16.msra.mxu0 0
    %1360 = vmatprep.subr.bf16.mxu0 0
    %1361 = vmatpush1.bf16.msra.mxu0 0
    %1362 = vmatprep.mubr.bf16.mxu0 0
    %1363 = vmatmul.mubr.bf16.gmra.mrb[0].mxu0 %v1319
    %v1364 = vpop.f32.mrb[0].mxu0
    %v1365 = vadd.f32 0.0, %v1364
    %v1366 = vpop.f32.mrb[0].mxu0
    %v1367 = vpop.f32.mrb[0].mxu0
    %v1368 = vadd.f32 0.0, %v1367
    %v1369 = vpop.f32.mrb[0].mxu0
    %1370 = vmatprep.mubr.bf16.mxu0 0
    %1371 = vmatmul.mubr.bf16.gmra.mrb[0].mxu0 %v1322
    %v1372 = vpop.f32.mrb[0].mxu0
    %v1373 = vadd.f32 0.0, %v1372
    %v1374 = vpop.f32.mrb[0].mxu0
    %v1375 = vpop.f32.mrb[0].mxu0
    %v1376 = vadd.f32 0.0, %v1375
    %v1377 = vpop.f32.mrb[0].mxu0
    %1378 = vmatprep.mubr.bf16.mxu0 0
    %1379 = vmatmul.mubr.bf16.gmra.mrb[0].mxu0 %v1325
    %v1380 = vpop.f32.mrb[0].mxu0
    %v1381 = vadd.f32 0.0, %v1380
    %v1382 = vpop.f32.mrb[0].mxu0
    %v1383 = vpop.f32.mrb[0].mxu0
    %v1384 = vadd.f32 0.0, %v1383
    %v1385 = vpop.f32.mrb[0].mxu0
    %1386 = vmatprep.mubr.bf16.mxu0 0
    %1387 = vmatmul.mubr.bf16.gmra.mrb[0].mxu0 %v1328
    %v1388 = vpop.f32.mrb[0].mxu0
    %v1389 = vadd.f32 0.0, %v1388
    %v1390 = vpop.f32.mrb[0].mxu0
    %v1391 = vpop.f32.mrb[0].mxu0
    %v1392 = vadd.f32 0.0, %v1391
    %v1393 = vpop.f32.mrb[0].mxu0
    %1394 = vdwg.mxu0
    %v1395 = vadd.f32 %v1144, %v1365
    %v1396 = vadd.f32 %v1145, %v1368
    %v1397 = vadd.f32 %v1146, %v1373
    %v1398 = vadd.f32 %v1147, %v1376
    %v1399 = vadd.f32 %v1148, %v1381
    %v1400 = vadd.f32 %v1149, %v1384
    %v1401 = vadd.f32 %v1150, %v1389
    %v1402 = vadd.f32 %v1151, %v1392
    %1403 = vset.pattern.permute.xlu0 5
    %1404 = vperm.xlu0 %1403, %v25
    %v1405 = vpop.permute.xlu0 %1404
    %1406 = vset.pattern.permute.xlu0 5
    %1407 = vperm.xlu0 %1406, %v26
    %v1408 = vpop.permute.xlu0 %1407
    %1409 = vset.pattern.permute.xlu0 5
    %1410 = vperm.xlu0 %1409, %v27
    %v1411 = vpop.permute.xlu0 %1410
    %1412 = vset.pattern.permute.xlu0 5
    %1413 = vperm.xlu0 %1412, %v28
    %v1414 = vpop.permute.xlu0 %1413
    %1415 = vset.pattern.permute.xlu0 5
    %1416 = vperm.xlu0 %1415, %v29
    %v1417 = vpop.permute.xlu0 %1416
    %1418 = vset.pattern.permute.xlu0 5
    %1419 = vperm.xlu0 %1418, %v30
    %v1420 = vpop.permute.xlu0 %1419
    %1421 = vset.pattern.permute.xlu0 5
    %1422 = vperm.xlu0 %1421, %v31
    %v1423 = vpop.permute.xlu0 %1422
    %1424 = vset.pattern.permute.xlu0 5
    %1425 = vperm.xlu0 %1424, %v32
    %v1426 = vpop.permute.xlu0 %1425
    %vm1427 = vcmp.eq.s32.totalorder %v1405, %v66
    %vm1428 = vcmp.eq.s32.totalorder %v1405, %v67
    %vm1429 = vcmp.eq.s32.totalorder %v1408, %v66
    %vm1430 = vcmp.eq.s32.totalorder %v1408, %v67
    %vm1431 = vcmp.eq.s32.totalorder %v1411, %v66
    %vm1432 = vcmp.eq.s32.totalorder %v1411, %v67
    %vm1433 = vcmp.eq.s32.totalorder %v1414, %v66
    %vm1434 = vcmp.eq.s32.totalorder %v1414, %v67
    %vm1435 = vcmp.eq.s32.totalorder %v1417, %v66
    %vm1436 = vcmp.eq.s32.totalorder %v1417, %v67
    %vm1437 = vcmp.eq.s32.totalorder %v1420, %v66
    %vm1438 = vcmp.eq.s32.totalorder %v1420, %v67
    %vm1439 = vcmp.eq.s32.totalorder %v1423, %v66
    %vm1440 = vcmp.eq.s32.totalorder %v1423, %v67
    %vm1441 = vcmp.eq.s32.totalorder %v1426, %v66
    %vm1442 = vcmp.eq.s32.totalorder %v1426, %v67
    %v1443 = vsel %vm1427, 1, 0
    %v1444 = vsel %vm1428, 1, 0
    %v1445 = vsel %vm1429, 1, 0
    %v1446 = vsel %vm1430, 1, 0
    %v1447 = vsel %vm1431, 1, 0
    %v1448 = vsel %vm1432, 1, 0
    %v1449 = vsel %vm1433, 1, 0
    %v1450 = vsel %vm1434, 1, 0
    %v1451 = vsel %vm1435, 1, 0
    %v1452 = vsel %vm1436, 1, 0
    %v1453 = vsel %vm1437, 1, 0
    %v1454 = vsel %vm1438, 1, 0
    %v1455 = vsel %vm1439, 1, 0
    %v1456 = vsel %vm1440, 1, 0
    %v1457 = vsel %vm1441, 1, 0
    %v1458 = vsel %vm1442, 1, 0
    %v1459 = vcvt.s32.f32 %v1443
    %v1460 = vcvt.s32.f32 %v1444
    %v1461 = vcvt.s32.f32 %v1445
    %v1462 = vcvt.s32.f32 %v1446
    %v1463 = vcvt.s32.f32 %v1447
    %v1464 = vcvt.s32.f32 %v1448
    %v1465 = vcvt.s32.f32 %v1449
    %v1466 = vcvt.s32.f32 %v1450
    %v1467 = vcvt.s32.f32 %v1451
    %v1468 = vcvt.s32.f32 %v1452
    %v1469 = vcvt.s32.f32 %v1453
    %v1470 = vcvt.s32.f32 %v1454
    %v1471 = vcvt.s32.f32 %v1455
    %v1472 = vcvt.s32.f32 %v1456
    %v1473 = vcvt.s32.f32 %v1457
    %v1474 = vcvt.s32.f32 %v1458
    %v1475 = vpack.c.bf16 %v1461, %v1459
    %v1476 = vpack.c.bf16 %v1462, %v1460
    %v1477 = vpack.c.bf16 %v1465, %v1463
    %v1478 = vpack.c.bf16 %v1466, %v1464
    %v1479 = vpack.c.bf16 %v1469, %v1467
    %v1480 = vpack.c.bf16 %v1470, %v1468
    %v1481 = vpack.c.bf16 %v1473, %v1471
    %v1482 = vpack.c.bf16 %v1474, %v1472
    %1483 = vmatprep.subr.bf16.mxu0 0
    %1484 = vmatpush1.bf16.msra.mxu0 %v212
    %1485 = vmatprep.subr.bf16.mxu0 0
    %1486 = vmatpush1.bf16.msra.mxu0 %v213
    %1487 = vmatprep.subr.bf16.mxu0 0
    %1488 = vmatpush1.bf16.msra.mxu0 %v214
    %1489 = vmatprep.subr.bf16.mxu0 0
    %1490 = vmatpush1.bf16.msra.mxu0 %v215
    %1491 = vmatprep.subr.bf16.mxu0 0
    %1492 = vmatpush1.bf16.msra.mxu0 %v216
    %1493 = vmatprep.subr.bf16.mxu0 0
    %1494 = vmatpush1.bf16.msra.mxu0 %v217
    %1495 = vmatprep.subr.bf16.mxu0 0
    %1496 = vmatpush1.bf16.msra.mxu0 %v218
    %1497 = vmatprep.subr.bf16.mxu0 0
    %1498 = vmatpush1.bf16.msra.mxu0 %v219
    %1499 = vmatprep.subr.bf16.mxu0 0
    %1500 = vmatpush1.bf16.msra.mxu0 %v220
    %1501 = vmatprep.subr.bf16.mxu0 0
    %1502 = vmatpush1.bf16.msra.mxu0 %v221
    %1503 = vmatprep.subr.bf16.mxu0 0
    %1504 = vmatpush1.bf16.msra.mxu0 %v222
    %1505 = vmatprep.subr.bf16.mxu0 0
    %1506 = vmatpush1.bf16.msra.mxu0 %v223
    %1507 = vmatprep.subr.bf16.mxu0 0
    %1508 = vmatpush1.bf16.msra.mxu0 %v224
    %1509 = vmatprep.subr.bf16.mxu0 0
    %1510 = vmatpush1.bf16.msra.mxu0 %v225
    %1511 = vmatprep.subr.bf16.mxu0 0
    %1512 = vmatpush1.bf16.msra.mxu0 %v226
    %1513 = vmatprep.subr.bf16.mxu0 0
    %1514 = vmatpush1.bf16.msra.mxu0 %v227
    %1515 = vmatprep.mubr.bf16.mxu0 %v1476
    %1516 = vmatmul.mubr.bf16.gmra.mrb[0].mxu0 %v1475
    %v1517 = vpop.f32.mrb[0].mxu0
    %v1518 = vadd.f32 0.0, %v1517
    %v1519 = vpop.f32.mrb[0].mxu0
    %v1520 = vpop.f32.mrb[0].mxu0
    %v1521 = vadd.f32 0.0, %v1520
    %v1522 = vpop.f32.mrb[0].mxu0
    %1523 = vmatprep.mubr.bf16.mxu0 %v1478
    %1524 = vmatmul.mubr.bf16.gmra.mrb[0].mxu0 %v1477
    %v1525 = vpop.f32.mrb[0].mxu0
    %v1526 = vadd.f32 0.0, %v1525
    %v1527 = vpop.f32.mrb[0].mxu0
    %v1528 = vpop.f32.mrb[0].mxu0
    %v1529 = vadd.f32 0.0, %v1528
    %v1530 = vpop.f32.mrb[0].mxu0
    %1531 = vmatprep.mubr.bf16.mxu0 %v1480
    %1532 = vmatmul.mubr.bf16.gmra.mrb[0].mxu0 %v1479
    %v1533 = vpop.f32.mrb[0].mxu0
    %v1534 = vadd.f32 0.0, %v1533
    %v1535 = vpop.f32.mrb[0].mxu0
    %v1536 = vpop.f32.mrb[0].mxu0
    %v1537 = vadd.f32 0.0, %v1536
    %v1538 = vpop.f32.mrb[0].mxu0
    %1539 = vmatprep.mubr.bf16.mxu0 %v1482
    %1540 = vmatmul.mubr.bf16.gmra.mrb[0].mxu0 %v1481
    %v1541 = vpop.f32.mrb[0].mxu0
    %v1542 = vadd.f32 0.0, %v1541
    %v1543 = vpop.f32.mrb[0].mxu0
    %v1544 = vpop.f32.mrb[0].mxu0
    %v1545 = vadd.f32 0.0, %v1544
    %v1546 = vpop.f32.mrb[0].mxu0
    %1547 = vdwg.mxu0
    %v1548 = vpack.c.bf16 %v1521, %v1518
    %v1549 = vpack.c.bf16 %v1529, %v1526
    %v1550 = vpack.c.bf16 %v1537, %v1534
    %v1551 = vpack.c.bf16 %v1545, %v1542
    %s1552 = scalar_lea.vmem %s2, 80
    %v1553 = vld [vmem:[%s1552] sm:$0xf]
    %v1554 = vld [vmem:[%s1552 + $0x4] sm:$0xf]
    %v1555 = vld [vmem:[%s1552 + $0x8] sm:$0xf]
    %v1556 = vld [vmem:[%s1552 + $0xc] sm:$0xf]
    %v1561 = vunpack.c.l.b16 %v1553
    %v1562 = vunpack.c.l.b16 %v1554
    %v1563 = vunpack.c.l.b16 %v1555
    %v1564 = vunpack.c.l.b16 %v1556
    %v1565 = vpack.c.b16 %v1562, %v1561
    %v1566 = vpack.c.b16 %v1564, %v1563
    %v1570 = vsel %vm483, %v1548, 0
    %v1573 = vsel %vm483, %v1549, 0
    %v1576 = vsel %vm483, %v1550, 0
    %v1579 = vsel %vm483, %v1551, 0
    %1581 = vmatprep.subr.bf16.mxu0 0
    %1582 = vmatpush1.bf16.msra.mxu0 %v1565
    %1583 = vmatprep.subr.bf16.mxu0 0
    %1584 = vmatpush1.bf16.msra.mxu0 %v1566
    %1585 = vmatprep.subr.bf16.mxu0 0
    %1586 = vmatpush1.bf16.msra.mxu0 0
    %1587 = vmatprep.subr.bf16.mxu0 0
    %1588 = vmatpush1.bf16.msra.mxu0 0
    %1589 = vmatprep.subr.bf16.mxu0 0
    %1590 = vmatpush1.bf16.msra.mxu0 0
    %1591 = vmatprep.subr.bf16.mxu0 0
    %1592 = vmatpush1.bf16.msra.mxu0 0
    %1593 = vmatprep.subr.bf16.mxu0 0
    %1594 = vmatpush1.bf16.msra.mxu0 0
    %1595 = vmatprep.subr.bf16.mxu0 0
    %1596 = vmatpush1.bf16.msra.mxu0 0
    %1597 = vmatprep.subr.bf16.mxu0 0
    %1598 = vmatpush1.bf16.msra.mxu0 0
    %1599 = vmatprep.subr.bf16.mxu0 0
    %1600 = vmatpush1.bf16.msra.mxu0 0
    %1601 = vmatprep.subr.bf16.mxu0 0
    %1602 = vmatpush1.bf16.msra.mxu0 0
    %1603 = vmatprep.subr.bf16.mxu0 0
    %1604 = vmatpush1.bf16.msra.mxu0 0
    %1605 = vmatprep.subr.bf16.mxu0 0
    %1606 = vmatpush1.bf16.msra.mxu0 0
    %1607 = vmatprep.subr.bf16.mxu0 0
    %1608 = vmatpush1.bf16.msra.mxu0 0
    %1609 = vmatprep.subr.bf16.mxu0 0
    %1610 = vmatpush1.bf16.msra.mxu0 0
    %1611 = vmatprep.subr.bf16.mxu0 0
    %1612 = vmatpush1.bf16.msra.mxu0 0
    %1613 = vmatprep.mubr.bf16.mxu0 0
    %1614 = vmatmul.mubr.bf16.gmra.mrb[0].mxu0 %v1570
    %v1615 = vpop.f32.mrb[0].mxu0
    %v1616 = vadd.f32 0.0, %v1615
    %v1617 = vpop.f32.mrb[0].mxu0
    %v1618 = vpop.f32.mrb[0].mxu0
    %v1619 = vadd.f32 0.0, %v1618
    %v1620 = vpop.f32.mrb[0].mxu0
    %1621 = vmatprep.mubr.bf16.mxu0 0
    %1622 = vmatmul.mubr.bf16.gmra.mrb[0].mxu0 %v1573
    %v1623 = vpop.f32.mrb[0].mxu0
    %v1624 = vadd.f32 0.0, %v1623
    %v1625 = vpop.f32.mrb[0].mxu0
    %v1626 = vpop.f32.mrb[0].mxu0
    %v1627 = vadd.f32 0.0, %v1626
    %v1628 = vpop.f32.mrb[0].mxu0
    %1629 = vmatprep.mubr.bf16.mxu0 0
    %1630 = vmatmul.mubr.bf16.gmra.mrb[0].mxu0 %v1576
    %v1631 = vpop.f32.mrb[0].mxu0
    %v1632 = vadd.f32 0.0, %v1631
    %v1633 = vpop.f32.mrb[0].mxu0
    %v1634 = vpop.f32.mrb[0].mxu0
    %v1635 = vadd.f32 0.0, %v1634
    %v1636 = vpop.f32.mrb[0].mxu0
    %1637 = vmatprep.mubr.bf16.mxu0 0
    %1638 = vmatmul.mubr.bf16.gmra.mrb[0].mxu0 %v1579
    %v1639 = vpop.f32.mrb[0].mxu0
    %v1640 = vadd.f32 0.0, %v1639
    %v1641 = vpop.f32.mrb[0].mxu0
    %v1642 = vpop.f32.mrb[0].mxu0
    %v1643 = vadd.f32 0.0, %v1642
    %v1644 = vpop.f32.mrb[0].mxu0
    %1645 = vdwg.mxu0
    %v1646 = vadd.f32 %v1395, %v1616
    %v1647 = vadd.f32 %v1396, %v1619
    %v1648 = vadd.f32 %v1397, %v1624
    %v1649 = vadd.f32 %v1398, %v1627
    %v1650 = vadd.f32 %v1399, %v1632
    %v1651 = vadd.f32 %v1400, %v1635
    %v1652 = vadd.f32 %v1401, %v1640
    %v1653 = vadd.f32 %v1402, %v1643
    %1654 = vset.pattern.permute.xlu0 6
    %1655 = vperm.xlu0 %1654, %v25
    %v1656 = vpop.permute.xlu0 %1655
    %1657 = vset.pattern.permute.xlu0 6
    %1658 = vperm.xlu0 %1657, %v26
    %v1659 = vpop.permute.xlu0 %1658
    %1660 = vset.pattern.permute.xlu0 6
    %1661 = vperm.xlu0 %1660, %v27
    %v1662 = vpop.permute.xlu0 %1661
    %1663 = vset.pattern.permute.xlu0 6
    %1664 = vperm.xlu0 %1663, %v28
    %v1665 = vpop.permute.xlu0 %1664
    %1666 = vset.pattern.permute.xlu0 6
    %1667 = vperm.xlu0 %1666, %v29
    %v1668 = vpop.permute.xlu0 %1667
    %1669 = vset.pattern.permute.xlu0 6
    %1670 = vperm.xlu0 %1669, %v30
    %v1671 = vpop.permute.xlu0 %1670
    %1672 = vset.pattern.permute.xlu0 6
    %1673 = vperm.xlu0 %1672, %v31
    %v1674 = vpop.permute.xlu0 %1673
    %1675 = vset.pattern.permute.xlu0 6
    %1676 = vperm.xlu0 %1675, %v32
    %v1677 = vpop.permute.xlu0 %1676
    %vm1678 = vcmp.eq.s32.totalorder %v1656, %v66
    %vm1679 = vcmp.eq.s32.totalorder %v1656, %v67
    %vm1680 = vcmp.eq.s32.totalorder %v1659, %v66
    %vm1681 = vcmp.eq.s32.totalorder %v1659, %v67
    %vm1682 = vcmp.eq.s32.totalorder %v1662, %v66
    %vm1683 = vcmp.eq.s32.totalorder %v1662, %v67
    %vm1684 = vcmp.eq.s32.totalorder %v1665, %v66
    %vm1685 = vcmp.eq.s32.totalorder %v1665, %v67
    %vm1686 = vcmp.eq.s32.totalorder %v1668, %v66
    %vm1687 = vcmp.eq.s32.totalorder %v1668, %v67
    %vm1688 = vcmp.eq.s32.totalorder %v1671, %v66
    %vm1689 = vcmp.eq.s32.totalorder %v1671, %v67
    %vm1690 = vcmp.eq.s32.totalorder %v1674, %v66
    %vm1691 = vcmp.eq.s32.totalorder %v1674, %v67
    %vm1692 = vcmp.eq.s32.totalorder %v1677, %v66
    %vm1693 = vcmp.eq.s32.totalorder %v1677, %v67
    %v1694 = vsel %vm1678, 1, 0
    %v1695 = vsel %vm1679, 1, 0
    %v1696 = vsel %vm1680, 1, 0
    %v1697 = vsel %vm1681, 1, 0
    %v1698 = vsel %vm1682, 1, 0
    %v1699 = vsel %vm1683, 1, 0
    %v1700 = vsel %vm1684, 1, 0
    %v1701 = vsel %vm1685, 1, 0
    %v1702 = vsel %vm1686, 1, 0
    %v1703 = vsel %vm1687, 1, 0
    %v1704 = vsel %vm1688, 1, 0
    %v1705 = vsel %vm1689, 1, 0
    %v1706 = vsel %vm1690, 1, 0
    %v1707 = vsel %vm1691, 1, 0
    %v1708 = vsel %vm1692, 1, 0
    %v1709 = vsel %vm1693, 1, 0
    %v1710 = vcvt.s32.f32 %v1694
    %v1711 = vcvt.s32.f32 %v1695
    %v1712 = vcvt.s32.f32 %v1696
    %v1713 = vcvt.s32.f32 %v1697
    %v1714 = vcvt.s32.f32 %v1698
    %v1715 = vcvt.s32.f32 %v1699
    %v1716 = vcvt.s32.f32 %v1700
    %v1717 = vcvt.s32.f32 %v1701
    %v1718 = vcvt.s32.f32 %v1702
    %v1719 = vcvt.s32.f32 %v1703
    %v1720 = vcvt.s32.f32 %v1704
    %v1721 = vcvt.s32.f32 %v1705
    %v1722 = vcvt.s32.f32 %v1706
    %v1723 = vcvt.s32.f32 %v1707
    %v1724 = vcvt.s32.f32 %v1708
    %v1725 = vcvt.s32.f32 %v1709
    %v1726 = vpack.c.bf16 %v1712, %v1710
    %v1727 = vpack.c.bf16 %v1713, %v1711
    %v1728 = vpack.c.bf16 %v1716, %v1714
    %v1729 = vpack.c.bf16 %v1717, %v1715
    %v1730 = vpack.c.bf16 %v1720, %v1718
    %v1731 = vpack.c.bf16 %v1721, %v1719
    %v1732 = vpack.c.bf16 %v1724, %v1722
    %v1733 = vpack.c.bf16 %v1725, %v1723
    %1734 = vmatprep.subr.bf16.mxu0 0
    %1735 = vmatpush1.bf16.msra.mxu0 %v212
    %1736 = vmatprep.subr.bf16.mxu0 0
    %1737 = vmatpush1.bf16.msra.mxu0 %v213
    %1738 = vmatprep.subr.bf16.mxu0 0
    %1739 = vmatpush1.bf16.msra.mxu0 %v214
    %1740 = vmatprep.subr.bf16.mxu0 0
    %1741 = vmatpush1.bf16.msra.mxu0 %v215
    %1742 = vmatprep.subr.bf16.mxu0 0
    %1743 = vmatpush1.bf16.msra.mxu0 %v216
    %1744 = vmatprep.subr.bf16.mxu0 0
    %1745 = vmatpush1.bf16.msra.mxu0 %v217
    %1746 = vmatprep.subr.bf16.mxu0 0
    %1747 = vmatpush1.bf16.msra.mxu0 %v218
    %1748 = vmatprep.subr.bf16.mxu0 0
    %1749 = vmatpush1.bf16.msra.mxu0 %v219
    %1750 = vmatprep.subr.bf16.mxu0 0
    %1751 = vmatpush1.bf16.msra.mxu0 %v220
    %1752 = vmatprep.subr.bf16.mxu0 0
    %1753 = vmatpush1.bf16.msra.mxu0 %v221
    %1754 = vmatprep.subr.bf16.mxu0 0
    %1755 = vmatpush1.bf16.msra.mxu0 %v222
    %1756 = vmatprep.subr.bf16.mxu0 0
    %1757 = vmatpush1.bf16.msra.mxu0 %v223
    %1758 = vmatprep.subr.bf16.mxu0 0
    %1759 = vmatpush1.bf16.msra.mxu0 %v224
    %1760 = vmatprep.subr.bf16.mxu0 0
    %1761 = vmatpush1.bf16.msra.mxu0 %v225
    %1762 = vmatprep.subr.bf16.mxu0 0
    %1763 = vmatpush1.bf16.msra.mxu0 %v226
    %1764 = vmatprep.subr.bf16.mxu0 0
    %1765 = vmatpush1.bf16.msra.mxu0 %v227
    %1766 = vmatprep.mubr.bf16.mxu0 %v1727
    %1767 = vmatmul.mubr.bf16.gmra.mrb[0].mxu0 %v1726
    %v1768 = vpop.f32.mrb[0].mxu0
    %v1769 = vadd.f32 0.0, %v1768
    %v1770 = vpop.f32.mrb[0].mxu0
    %v1771 = vpop.f32.mrb[0].mxu0
    %v1772 = vadd.f32 0.0, %v1771
    %v1773 = vpop.f32.mrb[0].mxu0
    %1774 = vmatprep.mubr.bf16.mxu0 %v1729
    %1775 = vmatmul.mubr.bf16.gmra.mrb[0].mxu0 %v1728
    %v1776 = vpop.f32.mrb[0].mxu0
    %v1777 = vadd.f32 0.0, %v1776
    %v1778 = vpop.f32.mrb[0].mxu0
    %v1779 = vpop.f32.mrb[0].mxu0
    %v1780 = vadd.f32 0.0, %v1779
    %v1781 = vpop.f32.mrb[0].mxu0
    %1782 = vmatprep.mubr.bf16.mxu0 %v1731
    %1783 = vmatmul.mubr.bf16.gmra.mrb[0].mxu0 %v1730
    %v1784 = vpop.f32.mrb[0].mxu0
    %v1785 = vadd.f32 0.0, %v1784
    %v1786 = vpop.f32.mrb[0].mxu0
    %v1787 = vpop.f32.mrb[0].mxu0
    %v1788 = vadd.f32 0.0, %v1787
    %v1789 = vpop.f32.mrb[0].mxu0
    %1790 = vmatprep.mubr.bf16.mxu0 %v1733
    %1791 = vmatmul.mubr.bf16.gmra.mrb[0].mxu0 %v1732
    %v1792 = vpop.f32.mrb[0].mxu0
    %v1793 = vadd.f32 0.0, %v1792
    %v1794 = vpop.f32.mrb[0].mxu0
    %v1795 = vpop.f32.mrb[0].mxu0
    %v1796 = vadd.f32 0.0, %v1795
    %v1797 = vpop.f32.mrb[0].mxu0
    %1798 = vdwg.mxu0
    %v1799 = vpack.c.bf16 %v1772, %v1769
    %v1800 = vpack.c.bf16 %v1780, %v1777
    %v1801 = vpack.c.bf16 %v1788, %v1785
    %v1802 = vpack.c.bf16 %v1796, %v1793
    %s1803 = scalar_lea.vmem %s2, 96
    %v1804 = vld [vmem:[%s1803] sm:$0xf]
    %v1805 = vld [vmem:[%s1803 + $0x4] sm:$0xf]
    %v1806 = vld [vmem:[%s1803 + $0x8] sm:$0xf]
    %v1807 = vld [vmem:[%s1803 + $0xc] sm:$0xf]
    %v1812 = vunpack.c.l.b16 %v1804
    %v1813 = vunpack.c.l.b16 %v1805
    %v1814 = vunpack.c.l.b16 %v1806
    %v1815 = vunpack.c.l.b16 %v1807
    %v1816 = vpack.c.b16 %v1813, %v1812
    %v1817 = vpack.c.b16 %v1815, %v1814
    %v1821 = vsel %vm483, %v1799, 0
    %v1824 = vsel %vm483, %v1800, 0
    %v1827 = vsel %vm483, %v1801, 0
    %v1830 = vsel %vm483, %v1802, 0
    %1832 = vmatprep.subr.bf16.mxu0 0
    %1833 = vmatpush1.bf16.msra.mxu0 %v1816
    %1834 = vmatprep.subr.bf16.mxu0 0
    %1835 = vmatpush1.bf16.msra.mxu0 %v1817
    %1836 = vmatprep.subr.bf16.mxu0 0
    %1837 = vmatpush1.bf16.msra.mxu0 0
    %1838 = vmatprep.subr.bf16.mxu0 0
    %1839 = vmatpush1.bf16.msra.mxu0 0
    %1840 = vmatprep.subr.bf16.mxu0 0
    %1841 = vmatpush1.bf16.msra.mxu0 0
    %1842 = vmatprep.subr.bf16.mxu0 0
    %1843 = vmatpush1.bf16.msra.mxu0 0
    %1844 = vmatprep.subr.bf16.mxu0 0
    %1845 = vmatpush1.bf16.msra.mxu0 0
    %1846 = vmatprep.subr.bf16.mxu0 0
    %1847 = vmatpush1.bf16.msra.mxu0 0
    %1848 = vmatprep.subr.bf16.mxu0 0
    %1849 = vmatpush1.bf16.msra.mxu0 0
    %1850 = vmatprep.subr.bf16.mxu0 0
    %1851 = vmatpush1.bf16.msra.mxu0 0
    %1852 = vmatprep.subr.bf16.mxu0 0
    %1853 = vmatpush1.bf16.msra.mxu0 0
    %1854 = vmatprep.subr.bf16.mxu0 0
    %1855 = vmatpush1.bf16.msra.mxu0 0
    %1856 = vmatprep.subr.bf16.mxu0 0
    %1857 = vmatpush1.bf16.msra.mxu0 0
    %1858 = vmatprep.subr.bf16.mxu0 0
    %1859 = vmatpush1.bf16.msra.mxu0 0
    %1860 = vmatprep.subr.bf16.mxu0 0
    %1861 = vmatpush1.bf16.msra.mxu0 0
    %1862 = vmatprep.subr.bf16.mxu0 0
    %1863 = vmatpush1.bf16.msra.mxu0 0
    %1864 = vmatprep.mubr.bf16.mxu0 0
    %1865 = vmatmul.mubr.bf16.gmra.mrb[0].mxu0 %v1821
    %v1866 = vpop.f32.mrb[0].mxu0
    %v1867 = vadd.f32 0.0, %v1866
    %v1868 = vpop.f32.mrb[0].mxu0
    %v1869 = vpop.f32.mrb[0].mxu0
    %v1870 = vadd.f32 0.0, %v1869
    %v1871 = vpop.f32.mrb[0].mxu0
    %1872 = vmatprep.mubr.bf16.mxu0 0
    %1873 = vmatmul.mubr.bf16.gmra.mrb[0].mxu0 %v1824
    %v1874 = vpop.f32.mrb[0].mxu0
    %v1875 = vadd.f32 0.0, %v1874
    %v1876 = vpop.f32.mrb[0].mxu0
    %v1877 = vpop.f32.mrb[0].mxu0
    %v1878 = vadd.f32 0.0, %v1877
    %v1879 = vpop.f32.mrb[0].mxu0
    %1880 = vmatprep.mubr.bf16.mxu0 0
    %1881 = vmatmul.mubr.bf16.gmra.mrb[0].mxu0 %v1827
    %v1882 = vpop.f32.mrb[0].mxu0
    %v1883 = vadd.f32 0.0, %v1882
    %v1884 = vpop.f32.mrb[0].mxu0
    %v1885 = vpop.f32.mrb[0].mxu0
    %v1886 = vadd.f32 0.0, %v1885
    %v1887 = vpop.f32.mrb[0].mxu0
    %1888 = vmatprep.mubr.bf16.mxu0 0
    %1889 = vmatmul.mubr.bf16.gmra.mrb[0].mxu0 %v1830
    %v1890 = vpop.f32.mrb[0].mxu0
    %v1891 = vadd.f32 0.0, %v1890
    %v1892 = vpop.f32.mrb[0].mxu0
    %v1893 = vpop.f32.mrb[0].mxu0
    %v1894 = vadd.f32 0.0, %v1893
    %v1895 = vpop.f32.mrb[0].mxu0
    %1896 = vdwg.mxu0
    %v1897 = vadd.f32 %v1646, %v1867
    %v1898 = vadd.f32 %v1647, %v1870
    %v1899 = vadd.f32 %v1648, %v1875
    %v1900 = vadd.f32 %v1649, %v1878
    %v1901 = vadd.f32 %v1650, %v1883
    %v1902 = vadd.f32 %v1651, %v1886
    %v1903 = vadd.f32 %v1652, %v1891
    %v1904 = vadd.f32 %v1653, %v1894
    %v1905 = vld [vmem:[%s3] sm:$0x1]
    %v1907 = vlaneseq
    %v1908 = vshrl.u32 %v1907, 7
    %v1909 = vsub.s32 0, %v1908
    %v1910 = vrot.slane %v1905, %v1909
    %v1912 = vadd.f32 %v1897, %v1910
    %v1913 = vadd.f32 %v1898, %v1910
    %v1914 = vadd.f32 %v1899, %v1910
    %v1915 = vadd.f32 %v1900, %v1910
    %v1916 = vadd.f32 %v1901, %v1910
    %v1917 = vadd.f32 %v1902, %v1910
    %v1918 = vadd.f32 %v1903, %v1910
    %v1919 = vadd.f32 %v1904, %v1910
    %v1920 = vtanh.pop %v1912
    %v1921 = vtanh.pop %v1913
    %v1922 = vtanh.pop %v1914
    %v1923 = vtanh.pop %v1915
    %v1924 = vtanh.pop %v1916
    %v1925 = vtanh.pop %v1917
    %v1926 = vtanh.pop %v1918
    %v1927 = vtanh.pop %v1919
    %v1928 = vpack.c.bf16 %v1921, %v1920
    %v1929 = vpack.c.bf16 %v1923, %v1922
    %v1930 = vpack.c.bf16 %v1925, %v1924
    %v1931 = vpack.c.bf16 %v1927, %v1926
    %v1932 = vld [vmem:[%s4] sm:$0xff]
    %v1933 = vld [vmem:[%s4 + $0x8] sm:$0xff]
    %v1934 = vld [vmem:[%s4 + $0x10] sm:$0xff]
    %v1935 = vld [vmem:[%s4 + $0x18] sm:$0xff]
    %v1936 = vld [vmem:[%s4 + $0x20] sm:$0xff]
    %v1937 = vld [vmem:[%s4 + $0x28] sm:$0xff]
    %v1938 = vld [vmem:[%s4 + $0x30] sm:$0xff]
    %v1939 = vld [vmem:[%s4 + $0x38] sm:$0xff]
    %v1940 = vld [vmem:[%s4 + $0x40] sm:$0xff]
    %v1941 = vld [vmem:[%s4 + $0x48] sm:$0xff]
    %v1942 = vld [vmem:[%s4 + $0x50] sm:$0xff]
    %v1943 = vld [vmem:[%s4 + $0x58] sm:$0xff]
    %v1944 = vld [vmem:[%s4 + $0x60] sm:$0xff]
    %v1945 = vld [vmem:[%s4 + $0x68] sm:$0xff]
    %v1946 = vld [vmem:[%s4 + $0x70] sm:$0xff]
    %v1947 = vld [vmem:[%s4 + $0x78] sm:$0xff]
    %v1948 = vld [vmem:[%s5] sm:$0x3]
    %v1950 = vlaneseq
    %v1951 = vshrl.u32 %v1950, 7
    %v1952 = vsub.s32 0, %v1951
    %v1953 = vrot.slane %v1948, %v1952
    %v1954 = vlaneseq
    %v1955 = vshrl.u32 %v1954, 7
    %v1956 = vsub.s32 1, %v1955
    %v1957 = vrot.slane %v1948, %v1956
    %v1976 = vunpack.c.l.b16 %v1932
    %v1977 = vunpack.c.h.b16 %v1932
    %v1978 = vunpack.c.l.b16 %v1933
    %v1979 = vunpack.c.h.b16 %v1933
    %v1980 = vunpack.c.l.b16 %v1934
    %v1981 = vunpack.c.h.b16 %v1934
    %v1982 = vunpack.c.l.b16 %v1935
    %v1983 = vunpack.c.h.b16 %v1935
    %v1984 = vunpack.c.l.b16 %v1936
    %v1985 = vunpack.c.h.b16 %v1936
    %v1986 = vunpack.c.l.b16 %v1937
    %v1987 = vunpack.c.h.b16 %v1937
    %v1988 = vunpack.c.l.b16 %v1938
    %v1989 = vunpack.c.h.b16 %v1938
    %v1990 = vunpack.c.l.b16 %v1939
    %v1991 = vunpack.c.h.b16 %v1939
    %v1992 = vunpack.c.l.b16 %v1940
    %v1993 = vunpack.c.h.b16 %v1940
    %v1994 = vunpack.c.l.b16 %v1941
    %v1995 = vunpack.c.h.b16 %v1941
    %v1996 = vunpack.c.l.b16 %v1942
    %v1997 = vunpack.c.h.b16 %v1942
    %v1998 = vunpack.c.l.b16 %v1943
    %v1999 = vunpack.c.h.b16 %v1943
    %v2000 = vunpack.c.l.b16 %v1944
    %v2001 = vunpack.c.h.b16 %v1944
    %v2002 = vunpack.c.l.b16 %v1945
    %v2003 = vunpack.c.h.b16 %v1945
    %v2004 = vunpack.c.l.b16 %v1946
    %v2005 = vunpack.c.h.b16 %v1946
    %v2006 = vunpack.c.l.b16 %v1947
    %v2007 = vunpack.c.h.b16 %v1947
    %v2008 = vpack.c.b16 %v1978, %v1976
    %v2009 = vpack.c.b16 %v1979, %v1977
    %v2010 = vpack.c.b16 %v1982, %v1980
    %v2011 = vpack.c.b16 %v1983, %v1981
    %v2012 = vpack.c.b16 %v1986, %v1984
    %v2013 = vpack.c.b16 %v1987, %v1985
    %v2014 = vpack.c.b16 %v1990, %v1988
    %v2015 = vpack.c.b16 %v1991, %v1989
    %v2016 = vpack.c.b16 %v1994, %v1992
    %v2017 = vpack.c.b16 %v1995, %v1993
    %v2018 = vpack.c.b16 %v1998, %v1996
    %v2019 = vpack.c.b16 %v1999, %v1997
    %v2020 = vpack.c.b16 %v2002, %v2000
    %v2021 = vpack.c.b16 %v2003, %v2001
    %v2022 = vpack.c.b16 %v2006, %v2004
    %v2023 = vpack.c.b16 %v2007, %v2005
    %2040 = vmatprep.subr.bf16.mxu0 %v2009
    %2041 = vmatpush1.bf16.msra.mxu0 %v2008
    %2042 = vmatprep.subr.bf16.mxu0 %v2011
    %2043 = vmatpush1.bf16.msra.mxu0 %v2010
    %2044 = vmatprep.subr.bf16.mxu0 %v2013
    %2045 = vmatpush1.bf16.msra.mxu0 %v2012
    %2046 = vmatprep.subr.bf16.mxu0 %v2015
    %2047 = vmatpush1.bf16.msra.mxu0 %v2014
    %2048 = vmatprep.subr.bf16.mxu0 %v2017
    %2049 = vmatpush1.bf16.msra.mxu0 %v2016
    %2050 = vmatprep.subr.bf16.mxu0 %v2019
    %2051 = vmatpush1.bf16.msra.mxu0 %v2018
    %2052 = vmatprep.subr.bf16.mxu0 %v2021
    %2053 = vmatpush1.bf16.msra.mxu0 %v2020
    %2054 = vmatprep.subr.bf16.mxu0 %v2023
    %2055 = vmatpush1.bf16.msra.mxu0 %v2022
    %2056 = vmatprep.subr.bf16.mxu0 0
    %2057 = vmatpush1.bf16.msra.mxu0 0
    %2058 = vmatprep.subr.bf16.mxu0 0
    %2059 = vmatpush1.bf16.msra.mxu0 0
    %2060 = vmatprep.subr.bf16.mxu0 0
    %2061 = vmatpush1.bf16.msra.mxu0 0
    %2062 = vmatprep.subr.bf16.mxu0 0
    %2063 = vmatpush1.bf16.msra.mxu0 0
    %2064 = vmatprep.subr.bf16.mxu0 0
    %2065 = vmatpush1.bf16.msra.mxu0 0
    %2066 = vmatprep.subr.bf16.mxu0 0
    %2067 = vmatpush1.bf16.msra.mxu0 0
    %2068 = vmatprep.subr.bf16.mxu0 0
    %2069 = vmatpush1.bf16.msra.mxu0 0
    %2070 = vmatprep.subr.bf16.mxu0 0
    %2071 = vmatpush1.bf16.msra.mxu0 0
    %2072 = vmatprep.mubr.bf16.mxu0 0
    %2073 = vmatmul.mubr.bf16.gmra.mrb[0].mxu0 %v1928
    %v2074 = vpop.f32.mrb[0].mxu0
    %v2075 = vadd.f32 %v1953, %v2074
    %v2076 = vpop.f32.mrb[0].mxu0
    %v2077 = vadd.f32 %v1957, %v2076
    %v2078 = vpop.f32.mrb[0].mxu0
    %v2079 = vadd.f32 %v1953, %v2078
    %v2080 = vpop.f32.mrb[0].mxu0
    %v2081 = vadd.f32 %v1957, %v2080
    %2082 = vmatprep.mubr.bf16.mxu0 0
    %2083 = vmatmul.mubr.bf16.gmra.mrb[0].mxu0 %v1929
    %v2084 = vpop.f32.mrb[0].mxu0
    %v2085 = vadd.f32 %v1953, %v2084
    %v2086 = vpop.f32.mrb[0].mxu0
    %v2087 = vadd.f32 %v1957, %v2086
    %v2088 = vpop.f32.mrb[0].mxu0
    %v2089 = vadd.f32 %v1953, %v2088
    %v2090 = vpop.f32.mrb[0].mxu0
    %v2091 = vadd.f32 %v1957, %v2090
    %2092 = vmatprep.mubr.bf16.mxu0 0
    %2093 = vmatmul.mubr.bf16.gmra.mrb[0].mxu0 %v1930
    %v2094 = vpop.f32.mrb[0].mxu0
    %v2095 = vadd.f32 %v1953, %v2094
    %v2096 = vpop.f32.mrb[0].mxu0
    %v2097 = vadd.f32 %v1957, %v2096
    %v2098 = vpop.f32.mrb[0].mxu0
    %v2099 = vadd.f32 %v1953, %v2098
    %v2100 = vpop.f32.mrb[0].mxu0
    %v2101 = vadd.f32 %v1957, %v2100
    %2102 = vmatprep.mubr.bf16.mxu0 0
    %2103 = vmatmul.mubr.bf16.gmra.mrb[0].mxu0 %v1931
    %v2104 = vpop.f32.mrb[0].mxu0
    %v2105 = vadd.f32 %v1953, %v2104
    %v2106 = vpop.f32.mrb[0].mxu0
    %v2107 = vadd.f32 %v1957, %v2106
    %v2108 = vpop.f32.mrb[0].mxu0
    %v2109 = vadd.f32 %v1953, %v2108
    %v2110 = vpop.f32.mrb[0].mxu0
    %v2111 = vadd.f32 %v1957, %v2110
    %2112 = vdwg.mxu0
    %v2113 = vmax.f32 %v2075, %v2077
    %2114 = vmax.xlane.f32.xlu0 %v2113
    %v2115 = vpop.xlane.xlu0 %2114
    %v2116 = vmax.f32 %v2079, %v2081
    %2117 = vmax.xlane.f32.xlu0 %v2116
    %v2118 = vpop.xlane.xlu0 %2117
    %v2119 = vmax.f32 %v2085, %v2087
    %2120 = vmax.xlane.f32.xlu0 %v2119
    %v2121 = vpop.xlane.xlu0 %2120
    %v2122 = vmax.f32 %v2089, %v2091
    %2123 = vmax.xlane.f32.xlu0 %v2122
    %v2124 = vpop.xlane.xlu0 %2123
    %v2125 = vmax.f32 %v2095, %v2097
    %2126 = vmax.xlane.f32.xlu0 %v2125
    %v2127 = vpop.xlane.xlu0 %2126
    %v2128 = vmax.f32 %v2099, %v2101
    %2129 = vmax.xlane.f32.xlu0 %v2128
    %v2130 = vpop.xlane.xlu0 %2129
    %v2131 = vmax.f32 %v2105, %v2107
    %2132 = vmax.xlane.f32.xlu0 %v2131
    %v2133 = vpop.xlane.xlu0 %2132
    %v2134 = vmax.f32 %v2109, %v2111
    %2135 = vmax.xlane.f32.xlu0 %v2134
    %v2136 = vpop.xlane.xlu0 %2135
    %v2137 = vsub.f32 %v2075, %v2115
    %v2138 = vsub.f32 %v2077, %v2115
    %v2139 = vsub.f32 %v2079, %v2118
    %v2140 = vsub.f32 %v2081, %v2118
    %v2141 = vsub.f32 %v2085, %v2121
    %v2142 = vsub.f32 %v2087, %v2121
    %v2143 = vsub.f32 %v2089, %v2124
    %v2144 = vsub.f32 %v2091, %v2124
    %v2145 = vsub.f32 %v2095, %v2127
    %v2146 = vsub.f32 %v2097, %v2127
    %v2147 = vsub.f32 %v2099, %v2130
    %v2148 = vsub.f32 %v2101, %v2130
    %v2149 = vsub.f32 %v2105, %v2133
    %v2150 = vsub.f32 %v2107, %v2133
    %v2151 = vsub.f32 %v2109, %v2136
    %v2152 = vsub.f32 %v2111, %v2136
    %v2153 = vmul.f32 %v2137, 1.442695
    %v2154 = vpow.pop %v2153
    %v2155 = vmul.f32 %v2138, 1.442695
    %v2156 = vpow.pop %v2155
    %v2157 = vmul.f32 %v2139, 1.442695
    %v2158 = vpow.pop %v2157
    %v2159 = vmul.f32 %v2140, 1.442695
    %v2160 = vpow.pop %v2159
    %v2161 = vmul.f32 %v2141, 1.442695
    %v2162 = vpow.pop %v2161
    %v2163 = vmul.f32 %v2142, 1.442695
    %v2164 = vpow.pop %v2163
    %v2165 = vmul.f32 %v2143, 1.442695
    %v2166 = vpow.pop %v2165
    %v2167 = vmul.f32 %v2144, 1.442695
    %v2168 = vpow.pop %v2167
    %v2169 = vmul.f32 %v2145, 1.442695
    %v2170 = vpow.pop %v2169
    %v2171 = vmul.f32 %v2146, 1.442695
    %v2172 = vpow.pop %v2171
    %v2173 = vmul.f32 %v2147, 1.442695
    %v2174 = vpow.pop %v2173
    %v2175 = vmul.f32 %v2148, 1.442695
    %v2176 = vpow.pop %v2175
    %v2177 = vmul.f32 %v2149, 1.442695
    %v2178 = vpow.pop %v2177
    %v2179 = vmul.f32 %v2150, 1.442695
    %v2180 = vpow.pop %v2179
    %v2181 = vmul.f32 %v2151, 1.442695
    %v2182 = vpow.pop %v2181
    %v2183 = vmul.f32 %v2152, 1.442695
    %v2184 = vpow.pop %v2183
    %v2185 = vadd.f32 %v2154, %v2156
    %2186 = vadd.xlane.f32.xlu0 %v2185
    %v2187 = vpop.xlane.xlu0 %2186
    %v2188 = vadd.f32 %v2158, %v2160
    %2189 = vadd.xlane.f32.xlu0 %v2188
    %v2190 = vpop.xlane.xlu0 %2189
    %v2191 = vadd.f32 %v2162, %v2164
    %2192 = vadd.xlane.f32.xlu0 %v2191
    %v2193 = vpop.xlane.xlu0 %2192
    %v2194 = vadd.f32 %v2166, %v2168
    %2195 = vadd.xlane.f32.xlu0 %v2194
    %v2196 = vpop.xlane.xlu0 %2195
    %v2197 = vadd.f32 %v2170, %v2172
    %2198 = vadd.xlane.f32.xlu0 %v2197
    %v2199 = vpop.xlane.xlu0 %2198
    %v2200 = vadd.f32 %v2174, %v2176
    %2201 = vadd.xlane.f32.xlu0 %v2200
    %v2202 = vpop.xlane.xlu0 %2201
    %v2203 = vadd.f32 %v2178, %v2180
    %2204 = vadd.xlane.f32.xlu0 %v2203
    %v2205 = vpop.xlane.xlu0 %2204
    %v2206 = vadd.f32 %v2182, %v2184
    %2207 = vadd.xlane.f32.xlu0 %v2206
    %v2208 = vpop.xlane.xlu0 %2207
    %v2209 = vlog2.pop %v2187
    %v2210 = vmul.f32 %v2209, 0.6931472
    %v2211 = vlog2.pop %v2190
    %v2212 = vmul.f32 %v2211, 0.6931472
    %v2213 = vlog2.pop %v2193
    %v2214 = vmul.f32 %v2213, 0.6931472
    %v2215 = vlog2.pop %v2196
    %v2216 = vmul.f32 %v2215, 0.6931472
    %v2217 = vlog2.pop %v2199
    %v2218 = vmul.f32 %v2217, 0.6931472
    %v2219 = vlog2.pop %v2202
    %v2220 = vmul.f32 %v2219, 0.6931472
    %v2221 = vlog2.pop %v2205
    %v2222 = vmul.f32 %v2221, 0.6931472
    %v2223 = vlog2.pop %v2208
    %v2224 = vmul.f32 %v2223, 0.6931472
    %v2225 = vsub.f32 %v2137, %v2210
    %v2226 = vsub.f32 %v2138, %v2210
    %v2227 = vsub.f32 %v2139, %v2212
    %v2228 = vsub.f32 %v2140, %v2212
    %v2229 = vsub.f32 %v2141, %v2214
    %v2230 = vsub.f32 %v2142, %v2214
    %v2231 = vsub.f32 %v2143, %v2216
    %v2232 = vsub.f32 %v2144, %v2216
    %v2233 = vsub.f32 %v2145, %v2218
    %v2234 = vsub.f32 %v2146, %v2218
    %v2235 = vsub.f32 %v2147, %v2220
    %v2236 = vsub.f32 %v2148, %v2220
    %v2237 = vsub.f32 %v2149, %v2222
    %v2238 = vsub.f32 %v2150, %v2222
    %v2239 = vsub.f32 %v2151, %v2224
    %v2240 = vsub.f32 %v2152, %v2224
    %2241 = vst [vmem:[#allocation2] sm:$0xff] %v2225
    %2242 = vst [vmem:[#allocation2 + $0x8] sm:$0xff] %v2226
    %2243 = vst [vmem:[#allocation2 + $0x10] sm:$0xff] %v2227
    %2244 = vst [vmem:[#allocation2 + $0x18] sm:$0xff] %v2228
    %2245 = vst [vmem:[#allocation2 + $0x20] sm:$0xff] %v2229
    %2246 = vst [vmem:[#allocation2 + $0x28] sm:$0xff] %v2230
    %2247 = vst [vmem:[#allocation2 + $0x30] sm:$0xff] %v2231
    %2248 = vst [vmem:[#allocation2 + $0x38] sm:$0xff] %v2232
    %2249 = vst [vmem:[#allocation2 + $0x40] sm:$0xff] %v2233
    %2250 = vst [vmem:[#allocation2 + $0x48] sm:$0xff] %v2234
    %2251 = vst [vmem:[#allocation2 + $0x50] sm:$0xff] %v2235
    %2252 = vst [vmem:[#allocation2 + $0x58] sm:$0xff] %v2236
    %2253 = vst [vmem:[#allocation2 + $0x60] sm:$0xff] %v2237
    %2254 = vst [vmem:[#allocation2 + $0x68] sm:$0xff] %v2238
    %2255 = vst [vmem:[#allocation2 + $0x70] sm:$0xff] %v2239
    %2256 = vst [vmem:[#allocation2 + $0x78] sm:$0xff] %v2240
    // Predicated region
    $region26: #{_lambda_.1} parent=1 // pred_check
      _
    $region27: #{_lambda_.1} parent=1 // pred_check_branch
      %2258 = sbr.rel (0) target = $region29
    $region28: #{_lambda_.1} parent=1 // pred_region
      %s2260 = ssub.s32 2048, 2048
      %2261 = vsyncadd [#allocation3], %s2260
      %s2262 = sshll.u32 [#allocation2], 4
      %s2263 = int_to_ptr.vmem [resolvable:$true] %s2262
      %2268 = dma.vmem_to_hbm [thread:$0]  %s2263, 2048, %s6, [#allocation3], 256, 256, 16
    $region29: #{_lambda_.1} parent=1 // pred_fallthru
      _
    // Predicated region
    $region30: #{_lambda_.1} parent=1 // pred_check
      _
    $region31: #{_lambda_.1} parent=1 // pred_check_branch
      %2270 = sbr.rel (0) target = $region33
    $region32: #{_lambda_.1} parent=1 // pred_region
      %2271 = dma.done [#allocation3], 2048
    $region33: #{_lambda_.1} parent=1 // pred_fallthru
      _
    %2272 = vsyncpa [#allocation3], 1

</llo_original>
